<compile_context>
chip_gen: v6e
topology: v6e:2x2x1
jax: 0.10.0
libtpu: 0.0.40
codegen_flags: <defaults>
</compile_context>

<pallas_src>
import functools

import jax
import jax.numpy as jnp
from jax import lax
from jax.experimental import pallas as pl
from jax.experimental.pallas import tpu as pltpu


def _round_up(x: int, m: int) -> int:
    return ((x + m - 1) // m) * m


def _corr_loss_kernel(idx_ref,                      # SMEM: (B_pad,) int32 row ids
                      ow_ref, os_ref, conf_in_ref,  # inputs
                      loss_ref, conf_out_ref,       # outputs
                      gbuf, rbuf, sems,             # scratch
                      *, tb, batch, do_update):
    base = pl.program_id(0) * tb
    last_block_partial = (batch % tb) != 0          # static python bool

    # ---- 1) kick off the gather DMAs for this block's confidence rows -------
    # (padded rows redundantly fetch table row idx_ref[pad]=0; data is discarded)
    for r in range(tb):
        pltpu.make_async_copy(conf_in_ref.at[idx_ref[base + r]],
                              gbuf.at[r], sems.at[0]).start()

    # ---- 2) softmax work that does NOT need the gathered rows ---------------
    ow = ow_ref[...].astype(jnp.float32)            # (TB, C)
    osr = os_ref[...].astype(jnp.float32)           # (TB, C)

    def log_softmax_and_probs(x):
        m = jnp.max(x, axis=-1, keepdims=True)
        z = x - m
        e = jnp.exp(z)                              # reused for the probabilities
        s = jnp.sum(e, axis=-1, keepdims=True)
        inv_s = pl.reciprocal(s, approx=True)       # EUP slot, ~free
        inv_s = inv_s * (2.0 - s * inv_s)           # Newton -> f32 accurate
        inv_s = inv_s * (2.0 - s * inv_s)
        return z - jnp.log(s), e * inv_s            # log_softmax, softmax

    ls_w, pred_w = log_softmax_and_probs(ow)
    ls_s, pred_s = log_softmax_and_probs(osr)

    # ---- 3) wait for the gathered target rows --------------------------------
    for _r in range(tb):
        pltpu.make_async_copy(conf_in_ref.at[0], gbuf.at[0], sems.at[0]).wait()
    tgt = gbuf[...]                                 # (TB, C) f32

    # ---- 4) loss: sup term on non-candidates + symmetric KL(target || pred) --
    neg = (tgt == 0.0).astype(jnp.float32)
    sup = neg * (-jnp.log((jnp.abs(1.0 - pred_w) + 1e-9) *
                          (jnp.abs(1.0 - pred_s) + 1e-9)))      # fused single log
    log_tgt = jnp.log(jnp.where(tgt > 0.0, tgt, 1.0))           # safe log(target)
    kl = tgt * (2.0 * log_tgt - ls_w - ls_s)

    contrib = sup + kl                              # (TB, C)
    if last_block_partial:
        row_ids = lax.broadcasted_iota(jnp.int32, (tb, 1), 0)
        contrib = jnp.where(row_ids + base < batch, contrib, 0.0)
    per_row = jnp.sum(contrib, axis=-1, keepdims=True)          # (TB, 1)
    block_sum = jnp.sum(per_row, axis=0, keepdims=True)         # (1, 1)
    # lane-dense per-block partial loss (no cross-step accumulator -> parallel OK)
    loss_ref[0] = jnp.broadcast_to(block_sum, loss_ref.shape[1:])

    # ---- 5) revised confidence rows, scattered back in place -----------------
    if do_update:
        rev = (tgt > 0.0).astype(jnp.float32)
        rnew = rev * jnp.exp(0.5 * (ls_w + ls_s))   # == rev * sqrt(pred_w*pred_s)
        denom = jnp.sum(rnew, axis=-1, keepdims=True) + 1e-9
        inv = pl.reciprocal(denom, approx=True)
        inv = inv * (2.0 - denom * inv)
        inv = inv * (2.0 - denom * inv)
        rbuf[...] = rnew * inv

        for r in range(tb):
            if last_block_partial:
                @pl.when(base + r < batch)
                def _(r=r):
                    pltpu.make_async_copy(rbuf.at[r],
                                          conf_out_ref.at[idx_ref[base + r]],
                                          sems.at[1]).start()
            else:
                pltpu.make_async_copy(rbuf.at[r],
                                      conf_out_ref.at[idx_ref[base + r]],
                                      sems.at[1]).start()
        for r in range(tb):
            if last_block_partial:
                @pl.when(base + r < batch)
                def _():
                    pltpu.make_async_copy(rbuf.at[0], conf_out_ref.at[0],
                                          sems.at[1]).wait()
            else:
                pltpu.make_async_copy(rbuf.at[0], conf_out_ref.at[0],
                                      sems.at[1]).wait()


@functools.partial(jax.jit,
                   static_argnames=("update_target", "block_rows"),
                   donate_argnames=("confidence",))
def corr_loss(output_w, output_s, confidence, index,
              update_target=True, block_rows=None):
    """Functional CORR_loss.forward: returns (loss, updated_confidence).

    `confidence` is donated + aliased into the kernel output, so only the B
    touched rows ever move through HBM; the rest of the table stays in place.
    """
    B, C = output_w.shape
    N = confidence.shape[0]

    tb = block_rows if block_rows is not None else min(128, _round_up(B, 8))
    tb = _round_up(tb, 8)
    num_blocks = pl.cdiv(B, tb)
    b_pad = num_blocks * tb

    ow = jnp.pad(output_w, ((0, b_pad - B), (0, 0)))
    osr = jnp.pad(output_s, ((0, b_pad - B), (0, 0)))
    idx = jnp.pad(index.astype(jnp.int32), (0, b_pad - B))
    conf = confidence.astype(jnp.float32)

    kernel = functools.partial(_corr_loss_kernel, tb=tb, batch=B,
                               do_update=update_target)

    partials, new_conf = pl.pallas_call(
        kernel,
        out_shape=(
            jax.ShapeDtypeStruct((num_blocks, 8, 128), jnp.float32),  # partial losses
            jax.ShapeDtypeStruct((N, C), jnp.float32),                # aliased table
        ),
        grid_spec=pltpu.PrefetchScalarGridSpec(
            num_scalar_prefetch=1,              # `index` prefetched into SMEM
            grid=(num_blocks,),                 # one block of TB rows per step
            in_specs=[
                pl.BlockSpec((tb, C), lambda i, idx_ref: (i, 0)),
                pl.BlockSpec((tb, C), lambda i, idx_ref: (i, 0)),
                pl.BlockSpec(memory_space=pl.ANY),   # confidence table stays in HBM
            ],
            out_specs=(
                pl.BlockSpec((1, 8, 128), lambda i, idx_ref: (i, 0, 0)),
                pl.BlockSpec(memory_space=pl.ANY),   # in-place aliased table
            ),
            scratch_shapes=[
                pltpu.VMEM((tb, C), jnp.float32),    # gathered target rows
                pltpu.VMEM((tb, C), jnp.float32),    # revised rows staged for scatter
                pltpu.SemaphoreType.DMA((2,)),       # [gather, scatter] DMA sems
            ],
        ),
        # alias confidence (arg 3, counting the prefetched `index`) onto output 1
        input_output_aliases={3: 1},
        compiler_params=pltpu.CompilerParams(
            dimension_semantics=("parallel",)),      # no cross-step state -> megacore OK
    )(idx, ow, osr, conf)

    loss = jnp.sum(partials[:, 0, 0]) / B            # fold 1/B into the final reduce
    # TODO(synk): with update_target=False the table is returned unchanged (no
    # in-kernel write happens), matching the PyTorch module which leaves
    # self.confidence untouched in that case.
    return loss, new_conf


def _reference(output_w, output_s, confidence, index):
    # pure-JAX reference mirroring the PyTorch module
    target = confidence[index, :]
    ls_w = jax.nn.log_softmax(output_w, axis=1)
    ls_s = jax.nn.log_softmax(output_s, axis=1)
    pred_w = jnp.exp(ls_w)
    pred_s = jnp.exp(ls_s)
    neg = (target == 0.0).astype(jnp.float32)
    sup = neg * (-jnp.log(jnp.abs(1 - pred_w) + 1e-9)
                 - jnp.log(jnp.abs(1 - pred_s) + 1e-9))
    sup1 = jnp.sum(sup) / target.shape[0]
    kl_w = jnp.where(target > 0, target * (jnp.log(target) - ls_w), 0.0)
    kl_s = jnp.where(target > 0, target * (jnp.log(target) - ls_s), 0.0)
    con = (jnp.sum(kl_w) + jnp.sum(kl_s)) / target.shape[0]
    loss = sup1 + con
    rev = (target > 0).astype(jnp.float32)
    r = jnp.sqrt((rev * pred_s) * (rev * pred_w))
    r = r / (jnp.sum(r, axis=1, keepdims=True) + 1e-9)
    conf = confidence.at[index, :].set(r)
    return loss, conf


if __name__ == "__main__":
    key = jax.random.PRNGKey(0)
    k1, k2, k3, k4 = jax.random.split(key, 4)

    N, B, C = 32, 16, 16  # confidence table rows, batch, num classes

    # deterministic synthetic partial-label confidence table: random candidate
    # sets, at least one candidate per row, rows sum to 1.
    cand = (jax.random.uniform(k1, (N, C)) < 0.5).astype(jnp.float32)
    cand = cand.at[:, 0].set(1.0)
    confidence = cand / jnp.sum(cand, axis=1, keepdims=True)

    output_w = jax.random.normal(k2, (B, C), dtype=jnp.float32)
    output_s = jax.random.normal(k3, (B, C), dtype=jnp.float32)
    index = jax.random.permutation(k4, N)[:B]  # unique row indices

    # reference first (the kernel call donates `confidence`)
    ref_loss, ref_conf = jax.block_until_ready(
        _reference(output_w, output_s, confidence, index))

    loss, new_conf = corr_loss(output_w, output_s, confidence, index,
                               update_target=True, block_rows=8)
    jax.block_until_ready((loss, new_conf))

    assert jnp.allclose(loss, ref_loss, rtol=1e-4, atol=1e-4), (loss, ref_loss)
    assert jnp.allclose(new_conf, ref_conf, rtol=1e-5, atol=2e-5)

    print("KERNEL_OK")
</pallas_src>

<mosaic_0001>
module attributes {stable_mosaic.version = 11 : i64} {
  func.func @_corr_loss_kernel(%arg0: i32, %arg1: memref<16xi32, #tpu.memory_space<smem>>, %arg2: memref<8x16xf32, #tpu.memory_space<vmem>>, %arg3: memref<8x16xf32, #tpu.memory_space<vmem>>, %arg4: memref<32x16xf32, #tpu.memory_space<any>>, %arg5: memref<1x8x128xf32, #tpu.memory_space<vmem>>, %arg6: memref<32x16xf32, #tpu.memory_space<any>>, %arg7: memref<8x16xf32, #tpu.memory_space<vmem>>, %arg8: memref<8x16xf32, #tpu.memory_space<vmem>>, %arg9: memref<2x!tpu.dma_semaphore, #tpu.memory_space<semaphore_mem>>) attributes {dimension_semantics = [#tpu.dimension_semantics<parallel>], iteration_bounds = array<i64: 2>, scalar_prefetch = 1 : i64, scratch_operands = 3 : i64, tpu.core_type = #tpu.core_type<tc>, window_params = [{transform_indices = @transform_0, window_bounds = array<i64: 8, 16>}, {transform_indices = @transform_1, window_bounds = array<i64: 8, 16>}, {}, {transform_indices = @transform_3, window_bounds = array<i64: 1, 8, 128>}, {}]} {
    %c8_i32 = arith.constant 8 : i32
    %0 = arith.muli %arg0, %c8_i32 : i32
    %c0_i32 = arith.constant 0 : i32
    %1 = arith.addi %0, %c0_i32 : i32
    %2 = arith.index_cast %1 : i32 to index
    %3 = memref.load %arg1[%2] : memref<16xi32, #tpu.memory_space<smem>>
    %c0_i32_0 = arith.constant 0 : i32
    %c0_i32_1 = arith.constant 0 : i32
    %c0_i32_2 = arith.constant 0 : i32
    %4 = tpu.memref_slice %arg4[%3, %c0_i32_2] : memref<32x16xf32, #tpu.memory_space<any>> -> memref<1x16xf32, #tpu.memory_space<any>>
    %5 = tpu.memref_squeeze %4 : memref<1x16xf32, #tpu.memory_space<any>> -> memref<16xf32, #tpu.memory_space<any>>
    %c0_i32_3 = arith.constant 0 : i32
    %6 = tpu.memref_slice %arg7[%c0_i32_0, %c0_i32_3] : memref<8x16xf32, #tpu.memory_space<vmem>> -> memref<1x16xf32, #tpu.memory_space<vmem>>
    %7 = tpu.memref_squeeze %6 : memref<1x16xf32, #tpu.memory_space<vmem>> -> memref<16xf32, #tpu.memory_space<vmem>>
    %8 = tpu.memref_slice %arg9[%c0_i32_1] : memref<2x!tpu.dma_semaphore, #tpu.memory_space<semaphore_mem>> -> memref<1x!tpu.dma_semaphore, #tpu.memory_space<semaphore_mem>>
    %9 = tpu.memref_squeeze %8 : memref<1x!tpu.dma_semaphore, #tpu.memory_space<semaphore_mem>> -> memref<!tpu.dma_semaphore, #tpu.memory_space<semaphore_mem>>
    tpu.enqueue_dma source(%5 : memref<16xf32, #tpu.memory_space<any>>) target(%7 : memref<16xf32, #tpu.memory_space<vmem>>) target_semaphore(%9 : memref<!tpu.dma_semaphore, #tpu.memory_space<semaphore_mem>>)
    %c1_i32 = arith.constant 1 : i32
    %10 = arith.addi %0, %c1_i32 : i32
    %11 = arith.index_cast %10 : i32 to index
    %12 = memref.load %arg1[%11] : memref<16xi32, #tpu.memory_space<smem>>
    %c1_i32_4 = arith.constant 1 : i32
    %c0_i32_5 = arith.constant 0 : i32
    %c0_i32_6 = arith.constant 0 : i32
    %13 = tpu.memref_slice %arg4[%12, %c0_i32_6] : memref<32x16xf32, #tpu.memory_space<any>> -> memref<1x16xf32, #tpu.memory_space<any>>
    %14 = tpu.memref_squeeze %13 : memref<1x16xf32, #tpu.memory_space<any>> -> memref<16xf32, #tpu.memory_space<any>>
    %c0_i32_7 = arith.constant 0 : i32
    %15 = tpu.memref_slice %arg7[%c1_i32_4, %c0_i32_7] : memref<8x16xf32, #tpu.memory_space<vmem>> -> memref<1x16xf32, #tpu.memory_space<vmem>>
    %16 = tpu.memref_squeeze %15 : memref<1x16xf32, #tpu.memory_space<vmem>> -> memref<16xf32, #tpu.memory_space<vmem>>
    %17 = tpu.memref_slice %arg9[%c0_i32_5] : memref<2x!tpu.dma_semaphore, #tpu.memory_space<semaphore_mem>> -> memref<1x!tpu.dma_semaphore, #tpu.memory_space<semaphore_mem>>
    %18 = tpu.memref_squeeze %17 : memref<1x!tpu.dma_semaphore, #tpu.memory_space<semaphore_mem>> -> memref<!tpu.dma_semaphore, #tpu.memory_space<semaphore_mem>>
    tpu.enqueue_dma source(%14 : memref<16xf32, #tpu.memory_space<any>>) target(%16 : memref<16xf32, #tpu.memory_space<vmem>>) target_semaphore(%18 : memref<!tpu.dma_semaphore, #tpu.memory_space<semaphore_mem>>)
    %c2_i32 = arith.constant 2 : i32
    %19 = arith.addi %0, %c2_i32 : i32
    %20 = arith.index_cast %19 : i32 to index
    %21 = memref.load %arg1[%20] : memref<16xi32, #tpu.memory_space<smem>>
    %c2_i32_8 = arith.constant 2 : i32
    %c0_i32_9 = arith.constant 0 : i32
    %c0_i32_10 = arith.constant 0 : i32
    %22 = tpu.memref_slice %arg4[%21, %c0_i32_10] : memref<32x16xf32, #tpu.memory_space<any>> -> memref<1x16xf32, #tpu.memory_space<any>>
    %23 = tpu.memref_squeeze %22 : memref<1x16xf32, #tpu.memory_space<any>> -> memref<16xf32, #tpu.memory_space<any>>
    %c0_i32_11 = arith.constant 0 : i32
    %24 = tpu.memref_slice %arg7[%c2_i32_8, %c0_i32_11] : memref<8x16xf32, #tpu.memory_space<vmem>> -> memref<1x16xf32, #tpu.memory_space<vmem>>
    %25 = tpu.memref_squeeze %24 : memref<1x16xf32, #tpu.memory_space<vmem>> -> memref<16xf32, #tpu.memory_space<vmem>>
    %26 = tpu.memref_slice %arg9[%c0_i32_9] : memref<2x!tpu.dma_semaphore, #tpu.memory_space<semaphore_mem>> -> memref<1x!tpu.dma_semaphore, #tpu.memory_space<semaphore_mem>>
    %27 = tpu.memref_squeeze %26 : memref<1x!tpu.dma_semaphore, #tpu.memory_space<semaphore_mem>> -> memref<!tpu.dma_semaphore, #tpu.memory_space<semaphore_mem>>
    tpu.enqueue_dma source(%23 : memref<16xf32, #tpu.memory_space<any>>) target(%25 : memref<16xf32, #tpu.memory_space<vmem>>) target_semaphore(%27 : memref<!tpu.dma_semaphore, #tpu.memory_space<semaphore_mem>>)
    %c3_i32 = arith.constant 3 : i32
    %28 = arith.addi %0, %c3_i32 : i32
    %29 = arith.index_cast %28 : i32 to index
    %30 = memref.load %arg1[%29] : memref<16xi32, #tpu.memory_space<smem>>
    %c3_i32_12 = arith.constant 3 : i32
    %c0_i32_13 = arith.constant 0 : i32
    %c0_i32_14 = arith.constant 0 : i32
    %31 = tpu.memref_slice %arg4[%30, %c0_i32_14] : memref<32x16xf32, #tpu.memory_space<any>> -> memref<1x16xf32, #tpu.memory_space<any>>
    %32 = tpu.memref_squeeze %31 : memref<1x16xf32, #tpu.memory_space<any>> -> memref<16xf32, #tpu.memory_space<any>>
    %c0_i32_15 = arith.constant 0 : i32
    %33 = tpu.memref_slice %arg7[%c3_i32_12, %c0_i32_15] : memref<8x16xf32, #tpu.memory_space<vmem>> -> memref<1x16xf32, #tpu.memory_space<vmem>>
    %34 = tpu.memref_squeeze %33 : memref<1x16xf32, #tpu.memory_space<vmem>> -> memref<16xf32, #tpu.memory_space<vmem>>
    %35 = tpu.memref_slice %arg9[%c0_i32_13] : memref<2x!tpu.dma_semaphore, #tpu.memory_space<semaphore_mem>> -> memref<1x!tpu.dma_semaphore, #tpu.memory_space<semaphore_mem>>
    %36 = tpu.memref_squeeze %35 : memref<1x!tpu.dma_semaphore, #tpu.memory_space<semaphore_mem>> -> memref<!tpu.dma_semaphore, #tpu.memory_space<semaphore_mem>>
    tpu.enqueue_dma source(%32 : memref<16xf32, #tpu.memory_space<any>>) target(%34 : memref<16xf32, #tpu.memory_space<vmem>>) target_semaphore(%36 : memref<!tpu.dma_semaphore, #tpu.memory_space<semaphore_mem>>)
    %c4_i32 = arith.constant 4 : i32
    %37 = arith.addi %0, %c4_i32 : i32
    %38 = arith.index_cast %37 : i32 to index
    %39 = memref.load %arg1[%38] : memref<16xi32, #tpu.memory_space<smem>>
    %c4_i32_16 = arith.constant 4 : i32
    %c0_i32_17 = arith.constant 0 : i32
    %c0_i32_18 = arith.constant 0 : i32
    %40 = tpu.memref_slice %arg4[%39, %c0_i32_18] : memref<32x16xf32, #tpu.memory_space<any>> -> memref<1x16xf32, #tpu.memory_space<any>>
    %41 = tpu.memref_squeeze %40 : memref<1x16xf32, #tpu.memory_space<any>> -> memref<16xf32, #tpu.memory_space<any>>
    %c0_i32_19 = arith.constant 0 : i32
    %42 = tpu.memref_slice %arg7[%c4_i32_16, %c0_i32_19] : memref<8x16xf32, #tpu.memory_space<vmem>> -> memref<1x16xf32, #tpu.memory_space<vmem>>
    %43 = tpu.memref_squeeze %42 : memref<1x16xf32, #tpu.memory_space<vmem>> -> memref<16xf32, #tpu.memory_space<vmem>>
    %44 = tpu.memref_slice %arg9[%c0_i32_17] : memref<2x!tpu.dma_semaphore, #tpu.memory_space<semaphore_mem>> -> memref<1x!tpu.dma_semaphore, #tpu.memory_space<semaphore_mem>>
    %45 = tpu.memref_squeeze %44 : memref<1x!tpu.dma_semaphore, #tpu.memory_space<semaphore_mem>> -> memref<!tpu.dma_semaphore, #tpu.memory_space<semaphore_mem>>
    tpu.enqueue_dma source(%41 : memref<16xf32, #tpu.memory_space<any>>) target(%43 : memref<16xf32, #tpu.memory_space<vmem>>) target_semaphore(%45 : memref<!tpu.dma_semaphore, #tpu.memory_space<semaphore_mem>>)
    %c5_i32 = arith.constant 5 : i32
    %46 = arith.addi %0, %c5_i32 : i32
    %47 = arith.index_cast %46 : i32 to index
    %48 = memref.load %arg1[%47] : memref<16xi32, #tpu.memory_space<smem>>
    %c5_i32_20 = arith.constant 5 : i32
    %c0_i32_21 = arith.constant 0 : i32
    %c0_i32_22 = arith.constant 0 : i32
    %49 = tpu.memref_slice %arg4[%48, %c0_i32_22] : memref<32x16xf32, #tpu.memory_space<any>> -> memref<1x16xf32, #tpu.memory_space<any>>
    %50 = tpu.memref_squeeze %49 : memref<1x16xf32, #tpu.memory_space<any>> -> memref<16xf32, #tpu.memory_space<any>>
    %c0_i32_23 = arith.constant 0 : i32
    %51 = tpu.memref_slice %arg7[%c5_i32_20, %c0_i32_23] : memref<8x16xf32, #tpu.memory_space<vmem>> -> memref<1x16xf32, #tpu.memory_space<vmem>>
    %52 = tpu.memref_squeeze %51 : memref<1x16xf32, #tpu.memory_space<vmem>> -> memref<16xf32, #tpu.memory_space<vmem>>
    %53 = tpu.memref_slice %arg9[%c0_i32_21] : memref<2x!tpu.dma_semaphore, #tpu.memory_space<semaphore_mem>> -> memref<1x!tpu.dma_semaphore, #tpu.memory_space<semaphore_mem>>
    %54 = tpu.memref_squeeze %53 : memref<1x!tpu.dma_semaphore, #tpu.memory_space<semaphore_mem>> -> memref<!tpu.dma_semaphore, #tpu.memory_space<semaphore_mem>>
    tpu.enqueue_dma source(%50 : memref<16xf32, #tpu.memory_space<any>>) target(%52 : memref<16xf32, #tpu.memory_space<vmem>>) target_semaphore(%54 : memref<!tpu.dma_semaphore, #tpu.memory_space<semaphore_mem>>)
    %c6_i32 = arith.constant 6 : i32
    %55 = arith.addi %0, %c6_i32 : i32
    %56 = arith.index_cast %55 : i32 to index
    %57 = memref.load %arg1[%56] : memref<16xi32, #tpu.memory_space<smem>>
    %c6_i32_24 = arith.constant 6 : i32
    %c0_i32_25 = arith.constant 0 : i32
    %c0_i32_26 = arith.constant 0 : i32
    %58 = tpu.memref_slice %arg4[%57, %c0_i32_26] : memref<32x16xf32, #tpu.memory_space<any>> -> memref<1x16xf32, #tpu.memory_space<any>>
    %59 = tpu.memref_squeeze %58 : memref<1x16xf32, #tpu.memory_space<any>> -> memref<16xf32, #tpu.memory_space<any>>
    %c0_i32_27 = arith.constant 0 : i32
    %60 = tpu.memref_slice %arg7[%c6_i32_24, %c0_i32_27] : memref<8x16xf32, #tpu.memory_space<vmem>> -> memref<1x16xf32, #tpu.memory_space<vmem>>
    %61 = tpu.memref_squeeze %60 : memref<1x16xf32, #tpu.memory_space<vmem>> -> memref<16xf32, #tpu.memory_space<vmem>>
    %62 = tpu.memref_slice %arg9[%c0_i32_25] : memref<2x!tpu.dma_semaphore, #tpu.memory_space<semaphore_mem>> -> memref<1x!tpu.dma_semaphore, #tpu.memory_space<semaphore_mem>>
    %63 = tpu.memref_squeeze %62 : memref<1x!tpu.dma_semaphore, #tpu.memory_space<semaphore_mem>> -> memref<!tpu.dma_semaphore, #tpu.memory_space<semaphore_mem>>
    tpu.enqueue_dma source(%59 : memref<16xf32, #tpu.memory_space<any>>) target(%61 : memref<16xf32, #tpu.memory_space<vmem>>) target_semaphore(%63 : memref<!tpu.dma_semaphore, #tpu.memory_space<semaphore_mem>>)
    %c7_i32 = arith.constant 7 : i32
    %64 = arith.addi %0, %c7_i32 : i32
    %65 = arith.index_cast %64 : i32 to index
    %66 = memref.load %arg1[%65] : memref<16xi32, #tpu.memory_space<smem>>
    %c7_i32_28 = arith.constant 7 : i32
    %c0_i32_29 = arith.constant 0 : i32
    %c0_i32_30 = arith.constant 0 : i32
    %67 = tpu.memref_slice %arg4[%66, %c0_i32_30] : memref<32x16xf32, #tpu.memory_space<any>> -> memref<1x16xf32, #tpu.memory_space<any>>
    %68 = tpu.memref_squeeze %67 : memref<1x16xf32, #tpu.memory_space<any>> -> memref<16xf32, #tpu.memory_space<any>>
    %c0_i32_31 = arith.constant 0 : i32
    %69 = tpu.memref_slice %arg7[%c7_i32_28, %c0_i32_31] : memref<8x16xf32, #tpu.memory_space<vmem>> -> memref<1x16xf32, #tpu.memory_space<vmem>>
    %70 = tpu.memref_squeeze %69 : memref<1x16xf32, #tpu.memory_space<vmem>> -> memref<16xf32, #tpu.memory_space<vmem>>
    %71 = tpu.memref_slice %arg9[%c0_i32_29] : memref<2x!tpu.dma_semaphore, #tpu.memory_space<semaphore_mem>> -> memref<1x!tpu.dma_semaphore, #tpu.memory_space<semaphore_mem>>
    %72 = tpu.memref_squeeze %71 : memref<1x!tpu.dma_semaphore, #tpu.memory_space<semaphore_mem>> -> memref<!tpu.dma_semaphore, #tpu.memory_space<semaphore_mem>>
    tpu.enqueue_dma source(%68 : memref<16xf32, #tpu.memory_space<any>>) target(%70 : memref<16xf32, #tpu.memory_space<vmem>>) target_semaphore(%72 : memref<!tpu.dma_semaphore, #tpu.memory_space<semaphore_mem>>)
    %c0 = arith.constant 0 : index
    %c0_32 = arith.constant 0 : index
    %73 = vector.load %arg2[%c0, %c0_32] : memref<8x16xf32, #tpu.memory_space<vmem>>, vector<8x16xf32>
    %c0_33 = arith.constant 0 : index
    %c0_34 = arith.constant 0 : index
    %74 = vector.load %arg3[%c0_33, %c0_34] : memref<8x16xf32, #tpu.memory_space<vmem>>, vector<8x16xf32>
    %cst = arith.constant dense<0xFF800000> : vector<8xf32>
    %75 = vector.multi_reduction <maximumf>, %73, %cst [1] : vector<8x16xf32> to vector<8xf32>
    %76 = vector.shape_cast %75 : vector<8xf32> to vector<8x1xf32>
    %77 = vector.broadcast %76 : vector<8x1xf32> to vector<8x16xf32>
    %78 = arith.subf %73, %77 : vector<8x16xf32>
    %79 = math.exp %78 : vector<8x16xf32>
    %cst_35 = arith.constant dense<0.000000e+00> : vector<8xf32>
    %80 = vector.multi_reduction <add>, %79, %cst_35 [1] : vector<8x16xf32> to vector<8xf32>
    %81 = vector.shape_cast %80 : vector<8xf32> to vector<8x1xf32>
    %82 = tpu.reciprocal %81 {approx = true} : vector<8x1xf32> -> vector<8x1xf32>
    %83 = arith.mulf %81, %82 : vector<8x1xf32>
    %cst_36 = arith.constant 2.000000e+00 : f32
    %84 = vector.broadcast %cst_36 : f32 to vector<8x1xf32>
    %85 = arith.subf %84, %83 : vector<8x1xf32>
    %86 = arith.mulf %82, %85 : vector<8x1xf32>
    %87 = arith.mulf %81, %86 : vector<8x1xf32>
    %cst_37 = arith.constant 2.000000e+00 : f32
    %88 = vector.broadcast %cst_37 : f32 to vector<8x1xf32>
    %89 = arith.subf %88, %87 : vector<8x1xf32>
    %90 = arith.mulf %86, %89 : vector<8x1xf32>
    %91 = math.log %81 : vector<8x1xf32>
    %92 = vector.broadcast %91 : vector<8x1xf32> to vector<8x16xf32>
    %93 = arith.subf %78, %92 : vector<8x16xf32>
    %94 = vector.broadcast %90 : vector<8x1xf32> to vector<8x16xf32>
    %95 = arith.mulf %79, %94 : vector<8x16xf32>
    %cst_38 = arith.constant dense<0xFF800000> : vector<8xf32>
    %96 = vector.multi_reduction <maximumf>, %74, %cst_38 [1] : vector<8x16xf32> to vector<8xf32>
    %97 = vector.shape_cast %96 : vector<8xf32> to vector<8x1xf32>
    %98 = vector.broadcast %97 : vector<8x1xf32> to vector<8x16xf32>
    %99 = arith.subf %74, %98 : vector<8x16xf32>
    %100 = math.exp %99 : vector<8x16xf32>
    %cst_39 = arith.constant dense<0.000000e+00> : vector<8xf32>
    %101 = vector.multi_reduction <add>, %100, %cst_39 [1] : vector<8x16xf32> to vector<8xf32>
    %102 = vector.shape_cast %101 : vector<8xf32> to vector<8x1xf32>
    %103 = tpu.reciprocal %102 {approx = true} : vector<8x1xf32> -> vector<8x1xf32>
    %104 = arith.mulf %102, %103 : vector<8x1xf32>
    %cst_40 = arith.constant 2.000000e+00 : f32
    %105 = vector.broadcast %cst_40 : f32 to vector<8x1xf32>
    %106 = arith.subf %105, %104 : vector<8x1xf32>
    %107 = arith.mulf %103, %106 : vector<8x1xf32>
    %108 = arith.mulf %102, %107 : vector<8x1xf32>
    %cst_41 = arith.constant 2.000000e+00 : f32
    %109 = vector.broadcast %cst_41 : f32 to vector<8x1xf32>
    %110 = arith.subf %109, %108 : vector<8x1xf32>
    %111 = arith.mulf %107, %110 : vector<8x1xf32>
    %112 = math.log %102 : vector<8x1xf32>
    %113 = vector.broadcast %112 : vector<8x1xf32> to vector<8x16xf32>
    %114 = arith.subf %99, %113 : vector<8x16xf32>
    %115 = vector.broadcast %111 : vector<8x1xf32> to vector<8x16xf32>
    %116 = arith.mulf %100, %115 : vector<8x16xf32>
    %c0_i32_42 = arith.constant 0 : i32
    %c0_i32_43 = arith.constant 0 : i32
    %c0_i32_44 = arith.constant 0 : i32
    %c0_i32_45 = arith.constant 0 : i32
    %117 = tpu.memref_slice %arg4[%c0_i32_42, %c0_i32_45] : memref<32x16xf32, #tpu.memory_space<any>> -> memref<1x16xf32, #tpu.memory_space<any>>
    %118 = tpu.memref_squeeze %117 : memref<1x16xf32, #tpu.memory_space<any>> -> memref<16xf32, #tpu.memory_space<any>>
    %c0_i32_46 = arith.constant 0 : i32
    %119 = tpu.memref_slice %arg7[%c0_i32_43, %c0_i32_46] : memref<8x16xf32, #tpu.memory_space<vmem>> -> memref<1x16xf32, #tpu.memory_space<vmem>>
    %120 = tpu.memref_squeeze %119 : memref<1x16xf32, #tpu.memory_space<vmem>> -> memref<16xf32, #tpu.memory_space<vmem>>
    %121 = tpu.memref_slice %arg9[%c0_i32_44] : memref<2x!tpu.dma_semaphore, #tpu.memory_space<semaphore_mem>> -> memref<1x!tpu.dma_semaphore, #tpu.memory_space<semaphore_mem>>
    %122 = tpu.memref_squeeze %121 : memref<1x!tpu.dma_semaphore, #tpu.memory_space<semaphore_mem>> -> memref<!tpu.dma_semaphore, #tpu.memory_space<semaphore_mem>>
    tpu.wait_dma2 semaphore(%122 : memref<!tpu.dma_semaphore, #tpu.memory_space<semaphore_mem>>) src(%118 : memref<16xf32, #tpu.memory_space<any>>) dst(%120 : memref<16xf32, #tpu.memory_space<vmem>>)
    %c0_i32_47 = arith.constant 0 : i32
    %c0_i32_48 = arith.constant 0 : i32
    %c0_i32_49 = arith.constant 0 : i32
    %c0_i32_50 = arith.constant 0 : i32
    %123 = tpu.memref_slice %arg4[%c0_i32_47, %c0_i32_50] : memref<32x16xf32, #tpu.memory_space<any>> -> memref<1x16xf32, #tpu.memory_space<any>>
    %124 = tpu.memref_squeeze %123 : memref<1x16xf32, #tpu.memory_space<any>> -> memref<16xf32, #tpu.memory_space<any>>
    %c0_i32_51 = arith.constant 0 : i32
    %125 = tpu.memref_slice %arg7[%c0_i32_48, %c0_i32_51] : memref<8x16xf32, #tpu.memory_space<vmem>> -> memref<1x16xf32, #tpu.memory_space<vmem>>
    %126 = tpu.memref_squeeze %125 : memref<1x16xf32, #tpu.memory_space<vmem>> -> memref<16xf32, #tpu.memory_space<vmem>>
    %127 = tpu.memref_slice %arg9[%c0_i32_49] : memref<2x!tpu.dma_semaphore, #tpu.memory_space<semaphore_mem>> -> memref<1x!tpu.dma_semaphore, #tpu.memory_space<semaphore_mem>>
    %128 = tpu.memref_squeeze %127 : memref<1x!tpu.dma_semaphore, #tpu.memory_space<semaphore_mem>> -> memref<!tpu.dma_semaphore, #tpu.memory_space<semaphore_mem>>
    tpu.wait_dma2 semaphore(%128 : memref<!tpu.dma_semaphore, #tpu.memory_space<semaphore_mem>>) src(%124 : memref<16xf32, #tpu.memory_space<any>>) dst(%126 : memref<16xf32, #tpu.memory_space<vmem>>)
    %c0_i32_52 = arith.constant 0 : i32
    %c0_i32_53 = arith.constant 0 : i32
    %c0_i32_54 = arith.constant 0 : i32
    %c0_i32_55 = arith.constant 0 : i32
    %129 = tpu.memref_slice %arg4[%c0_i32_52, %c0_i32_55] : memref<32x16xf32, #tpu.memory_space<any>> -> memref<1x16xf32, #tpu.memory_space<any>>
    %130 = tpu.memref_squeeze %129 : memref<1x16xf32, #tpu.memory_space<any>> -> memref<16xf32, #tpu.memory_space<any>>
    %c0_i32_56 = arith.constant 0 : i32
    %131 = tpu.memref_slice %arg7[%c0_i32_53, %c0_i32_56] : memref<8x16xf32, #tpu.memory_space<vmem>> -> memref<1x16xf32, #tpu.memory_space<vmem>>
    %132 = tpu.memref_squeeze %131 : memref<1x16xf32, #tpu.memory_space<vmem>> -> memref<16xf32, #tpu.memory_space<vmem>>
    %133 = tpu.memref_slice %arg9[%c0_i32_54] : memref<2x!tpu.dma_semaphore, #tpu.memory_space<semaphore_mem>> -> memref<1x!tpu.dma_semaphore, #tpu.memory_space<semaphore_mem>>
    %134 = tpu.memref_squeeze %133 : memref<1x!tpu.dma_semaphore, #tpu.memory_space<semaphore_mem>> -> memref<!tpu.dma_semaphore, #tpu.memory_space<semaphore_mem>>
    tpu.wait_dma2 semaphore(%134 : memref<!tpu.dma_semaphore, #tpu.memory_space<semaphore_mem>>) src(%130 : memref<16xf32, #tpu.memory_space<any>>) dst(%132 : memref<16xf32, #tpu.memory_space<vmem>>)
    %c0_i32_57 = arith.constant 0 : i32
    %c0_i32_58 = arith.constant 0 : i32
    %c0_i32_59 = arith.constant 0 : i32
    %c0_i32_60 = arith.constant 0 : i32
    %135 = tpu.memref_slice %arg4[%c0_i32_57, %c0_i32_60] : memref<32x16xf32, #tpu.memory_space<any>> -> memref<1x16xf32, #tpu.memory_space<any>>
    %136 = tpu.memref_squeeze %135 : memref<1x16xf32, #tpu.memory_space<any>> -> memref<16xf32, #tpu.memory_space<any>>
    %c0_i32_61 = arith.constant 0 : i32
    %137 = tpu.memref_slice %arg7[%c0_i32_58, %c0_i32_61] : memref<8x16xf32, #tpu.memory_space<vmem>> -> memref<1x16xf32, #tpu.memory_space<vmem>>
    %138 = tpu.memref_squeeze %137 : memref<1x16xf32, #tpu.memory_space<vmem>> -> memref<16xf32, #tpu.memory_space<vmem>>
    %139 = tpu.memref_slice %arg9[%c0_i32_59] : memref<2x!tpu.dma_semaphore, #tpu.memory_space<semaphore_mem>> -> memref<1x!tpu.dma_semaphore, #tpu.memory_space<semaphore_mem>>
    %140 = tpu.memref_squeeze %139 : memref<1x!tpu.dma_semaphore, #tpu.memory_space<semaphore_mem>> -> memref<!tpu.dma_semaphore, #tpu.memory_space<semaphore_mem>>
    tpu.wait_dma2 semaphore(%140 : memref<!tpu.dma_semaphore, #tpu.memory_space<semaphore_mem>>) src(%136 : memref<16xf32, #tpu.memory_space<any>>) dst(%138 : memref<16xf32, #tpu.memory_space<vmem>>)
    %c0_i32_62 = arith.constant 0 : i32
    %c0_i32_63 = arith.constant 0 : i32
    %c0_i32_64 = arith.constant 0 : i32
    %c0_i32_65 = arith.constant 0 : i32
    %141 = tpu.memref_slice %arg4[%c0_i32_62, %c0_i32_65] : memref<32x16xf32, #tpu.memory_space<any>> -> memref<1x16xf32, #tpu.memory_space<any>>
    %142 = tpu.memref_squeeze %141 : memref<1x16xf32, #tpu.memory_space<any>> -> memref<16xf32, #tpu.memory_space<any>>
    %c0_i32_66 = arith.constant 0 : i32
    %143 = tpu.memref_slice %arg7[%c0_i32_63, %c0_i32_66] : memref<8x16xf32, #tpu.memory_space<vmem>> -> memref<1x16xf32, #tpu.memory_space<vmem>>
    %144 = tpu.memref_squeeze %143 : memref<1x16xf32, #tpu.memory_space<vmem>> -> memref<16xf32, #tpu.memory_space<vmem>>
    %145 = tpu.memref_slice %arg9[%c0_i32_64] : memref<2x!tpu.dma_semaphore, #tpu.memory_space<semaphore_mem>> -> memref<1x!tpu.dma_semaphore, #tpu.memory_space<semaphore_mem>>
    %146 = tpu.memref_squeeze %145 : memref<1x!tpu.dma_semaphore, #tpu.memory_space<semaphore_mem>> -> memref<!tpu.dma_semaphore, #tpu.memory_space<semaphore_mem>>
    tpu.wait_dma2 semaphore(%146 : memref<!tpu.dma_semaphore, #tpu.memory_space<semaphore_mem>>) src(%142 : memref<16xf32, #tpu.memory_space<any>>) dst(%144 : memref<16xf32, #tpu.memory_space<vmem>>)
    %c0_i32_67 = arith.constant 0 : i32
    %c0_i32_68 = arith.constant 0 : i32
    %c0_i32_69 = arith.constant 0 : i32
    %c0_i32_70 = arith.constant 0 : i32
    %147 = tpu.memref_slice %arg4[%c0_i32_67, %c0_i32_70] : memref<32x16xf32, #tpu.memory_space<any>> -> memref<1x16xf32, #tpu.memory_space<any>>
    %148 = tpu.memref_squeeze %147 : memref<1x16xf32, #tpu.memory_space<any>> -> memref<16xf32, #tpu.memory_space<any>>
    %c0_i32_71 = arith.constant 0 : i32
    %149 = tpu.memref_slice %arg7[%c0_i32_68, %c0_i32_71] : memref<8x16xf32, #tpu.memory_space<vmem>> -> memref<1x16xf32, #tpu.memory_space<vmem>>
    %150 = tpu.memref_squeeze %149 : memref<1x16xf32, #tpu.memory_space<vmem>> -> memref<16xf32, #tpu.memory_space<vmem>>
    %151 = tpu.memref_slice %arg9[%c0_i32_69] : memref<2x!tpu.dma_semaphore, #tpu.memory_space<semaphore_mem>> -> memref<1x!tpu.dma_semaphore, #tpu.memory_space<semaphore_mem>>
    %152 = tpu.memref_squeeze %151 : memref<1x!tpu.dma_semaphore, #tpu.memory_space<semaphore_mem>> -> memref<!tpu.dma_semaphore, #tpu.memory_space<semaphore_mem>>
    tpu.wait_dma2 semaphore(%152 : memref<!tpu.dma_semaphore, #tpu.memory_space<semaphore_mem>>) src(%148 : memref<16xf32, #tpu.memory_space<any>>) dst(%150 : memref<16xf32, #tpu.memory_space<vmem>>)
    %c0_i32_72 = arith.constant 0 : i32
    %c0_i32_73 = arith.constant 0 : i32
    %c0_i32_74 = arith.constant 0 : i32
    %c0_i32_75 = arith.constant 0 : i32
    %153 = tpu.memref_slice %arg4[%c0_i32_72, %c0_i32_75] : memref<32x16xf32, #tpu.memory_space<any>> -> memref<1x16xf32, #tpu.memory_space<any>>
    %154 = tpu.memref_squeeze %153 : memref<1x16xf32, #tpu.memory_space<any>> -> memref<16xf32, #tpu.memory_space<any>>
    %c0_i32_76 = arith.constant 0 : i32
    %155 = tpu.memref_slice %arg7[%c0_i32_73, %c0_i32_76] : memref<8x16xf32, #tpu.memory_space<vmem>> -> memref<1x16xf32, #tpu.memory_space<vmem>>
    %156 = tpu.memref_squeeze %155 : memref<1x16xf32, #tpu.memory_space<vmem>> -> memref<16xf32, #tpu.memory_space<vmem>>
    %157 = tpu.memref_slice %arg9[%c0_i32_74] : memref<2x!tpu.dma_semaphore, #tpu.memory_space<semaphore_mem>> -> memref<1x!tpu.dma_semaphore, #tpu.memory_space<semaphore_mem>>
    %158 = tpu.memref_squeeze %157 : memref<1x!tpu.dma_semaphore, #tpu.memory_space<semaphore_mem>> -> memref<!tpu.dma_semaphore, #tpu.memory_space<semaphore_mem>>
    tpu.wait_dma2 semaphore(%158 : memref<!tpu.dma_semaphore, #tpu.memory_space<semaphore_mem>>) src(%154 : memref<16xf32, #tpu.memory_space<any>>) dst(%156 : memref<16xf32, #tpu.memory_space<vmem>>)
    %c0_i32_77 = arith.constant 0 : i32
    %c0_i32_78 = arith.constant 0 : i32
    %c0_i32_79 = arith.constant 0 : i32
    %c0_i32_80 = arith.constant 0 : i32
    %159 = tpu.memref_slice %arg4[%c0_i32_77, %c0_i32_80] : memref<32x16xf32, #tpu.memory_space<any>> -> memref<1x16xf32, #tpu.memory_space<any>>
    %160 = tpu.memref_squeeze %159 : memref<1x16xf32, #tpu.memory_space<any>> -> memref<16xf32, #tpu.memory_space<any>>
    %c0_i32_81 = arith.constant 0 : i32
    %161 = tpu.memref_slice %arg7[%c0_i32_78, %c0_i32_81] : memref<8x16xf32, #tpu.memory_space<vmem>> -> memref<1x16xf32, #tpu.memory_space<vmem>>
    %162 = tpu.memref_squeeze %161 : memref<1x16xf32, #tpu.memory_space<vmem>> -> memref<16xf32, #tpu.memory_space<vmem>>
    %163 = tpu.memref_slice %arg9[%c0_i32_79] : memref<2x!tpu.dma_semaphore, #tpu.memory_space<semaphore_mem>> -> memref<1x!tpu.dma_semaphore, #tpu.memory_space<semaphore_mem>>
    %164 = tpu.memref_squeeze %163 : memref<1x!tpu.dma_semaphore, #tpu.memory_space<semaphore_mem>> -> memref<!tpu.dma_semaphore, #tpu.memory_space<semaphore_mem>>
    tpu.wait_dma2 semaphore(%164 : memref<!tpu.dma_semaphore, #tpu.memory_space<semaphore_mem>>) src(%160 : memref<16xf32, #tpu.memory_space<any>>) dst(%162 : memref<16xf32, #tpu.memory_space<vmem>>)
    %c0_82 = arith.constant 0 : index
    %c0_83 = arith.constant 0 : index
    %165 = vector.load %arg7[%c0_82, %c0_83] : memref<8x16xf32, #tpu.memory_space<vmem>>, vector<8x16xf32>
    %cst_84 = arith.constant 0.000000e+00 : f32
    %166 = vector.broadcast %cst_84 : f32 to vector<8x16xf32>
    %167 = arith.cmpf oeq, %165, %166 : vector<8x16xf32>
    %168 = arith.extui %167 : vector<8x16xi1> to vector<8x16xi32>
    %169 = arith.sitofp %168 : vector<8x16xi32> to vector<8x16xf32>
    %cst_85 = arith.constant 1.000000e+00 : f32
    %170 = vector.broadcast %cst_85 : f32 to vector<8x16xf32>
    %171 = arith.subf %170, %95 : vector<8x16xf32>
    %172 = math.absf %171 : vector<8x16xf32>
    %cst_86 = arith.constant 9.99999971E-10 : f32
    %173 = vector.broadcast %cst_86 : f32 to vector<8x16xf32>
    %174 = arith.addf %172, %173 : vector<8x16xf32>
    %cst_87 = arith.constant 1.000000e+00 : f32
    %175 = vector.broadcast %cst_87 : f32 to vector<8x16xf32>
    %176 = arith.subf %175, %116 : vector<8x16xf32>
    %177 = math.absf %176 : vector<8x16xf32>
    %cst_88 = arith.constant 9.99999971E-10 : f32
    %178 = vector.broadcast %cst_88 : f32 to vector<8x16xf32>
    %179 = arith.addf %177, %178 : vector<8x16xf32>
    %180 = arith.mulf %174, %179 : vector<8x16xf32>
    %181 = math.log %180 : vector<8x16xf32>
    %cst_89 = arith.constant 0.000000e+00 : f32
    %182 = vector.broadcast %cst_89 : f32 to vector<8x16xf32>
    %183 = arith.subf %182, %181 : vector<8x16xf32>
    %184 = arith.mulf %169, %183 : vector<8x16xf32>
    %cst_90 = arith.constant 0.000000e+00 : f32
    %185 = vector.broadcast %cst_90 : f32 to vector<8x16xf32>
    %186 = arith.cmpf ogt, %165, %185 : vector<8x16xf32>
    %cst_91 = arith.constant 1.000000e+00 : f32
    %187 = vector.broadcast %cst_91 : f32 to vector<8x16xf32>
    %188 = arith.select %186, %165, %187 : vector<8x16xi1>, vector<8x16xf32>
    %189 = math.log %188 : vector<8x16xf32>
    %cst_92 = arith.constant 2.000000e+00 : f32
    %190 = vector.broadcast %cst_92 : f32 to vector<8x16xf32>
    %191 = arith.mulf %190, %189 : vector<8x16xf32>
    %192 = arith.subf %191, %93 : vector<8x16xf32>
    %193 = arith.subf %192, %114 : vector<8x16xf32>
    %194 = arith.mulf %165, %193 : vector<8x16xf32>
    %195 = arith.addf %184, %194 : vector<8x16xf32>
    %cst_93 = arith.constant dense<0.000000e+00> : vector<8xf32>
    %196 = vector.multi_reduction <add>, %195, %cst_93 [1] : vector<8x16xf32> to vector<8xf32>
    %197 = vector.shape_cast %196 : vector<8xf32> to vector<8x1xf32>
    %cst_94 = arith.constant dense<0.000000e+00> : vector<1xf32>
    %198 = vector.multi_reduction <add>, %197, %cst_94 [0] : vector<8x1xf32> to vector<1xf32>
    %199 = vector.shape_cast %198 : vector<1xf32> to vector<1x1xf32>
    %200 = vector.shape_cast %199 : vector<1x1xf32> to vector<1x1xf32>
    %201 = vector.broadcast %200 : vector<1x1xf32> to vector<8x128xf32>
    %c0_95 = arith.constant 0 : index
    %c0_96 = arith.constant 0 : index
    %c0_97 = arith.constant 0 : index
    %202 = vector.load %arg5[%c0_95, %c0_96, %c0_97] : memref<1x8x128xf32, #tpu.memory_space<vmem>>, vector<1x8x128xf32>
    %203 = vector.shape_cast %202 : vector<1x8x128xf32> to vector<8x128xf32>
    %204 = vector.shape_cast %201 : vector<8x128xf32> to vector<1x8x128xf32>
    tpu.vector_store %arg5[%c0_95, %c0_96, %c0_97], %204 {strides = array<i32>} : memref<1x8x128xf32, #tpu.memory_space<vmem>>, vector<1x8x128xf32>,
    %cst_98 = arith.constant 0.000000e+00 : f32
    %205 = vector.broadcast %cst_98 : f32 to vector<8x16xf32>
    %206 = arith.cmpf ogt, %165, %205 : vector<8x16xf32>
    %207 = arith.extui %206 : vector<8x16xi1> to vector<8x16xi32>
    %208 = arith.sitofp %207 : vector<8x16xi32> to vector<8x16xf32>
    %209 = arith.addf %93, %114 : vector<8x16xf32>
    %cst_99 = arith.constant 5.000000e-01 : f32
    %210 = vector.broadcast %cst_99 : f32 to vector<8x16xf32>
    %211 = arith.mulf %210, %209 : vector<8x16xf32>
    %212 = math.exp %211 : vector<8x16xf32>
    %213 = arith.mulf %208, %212 : vector<8x16xf32>
    %cst_100 = arith.constant dense<0.000000e+00> : vector<8xf32>
    %214 = vector.multi_reduction <add>, %213, %cst_100 [1] : vector<8x16xf32> to vector<8xf32>
    %215 = vector.shape_cast %214 : vector<8xf32> to vector<8x1xf32>
    %cst_101 = arith.constant 9.99999971E-10 : f32
    %216 = vector.broadcast %cst_101 : f32 to vector<8x1xf32>
    %217 = arith.addf %215, %216 : vector<8x1xf32>
    %218 = tpu.reciprocal %217 {approx = true} : vector<8x1xf32> -> vector<8x1xf32>
    %219 = arith.mulf %217, %218 : vector<8x1xf32>
    %cst_102 = arith.constant 2.000000e+00 : f32
    %220 = vector.broadcast %cst_102 : f32 to vector<8x1xf32>
    %221 = arith.subf %220, %219 : vector<8x1xf32>
    %222 = arith.mulf %218, %221 : vector<8x1xf32>
    %223 = arith.mulf %217, %222 : vector<8x1xf32>
    %cst_103 = arith.constant 2.000000e+00 : f32
    %224 = vector.broadcast %cst_103 : f32 to vector<8x1xf32>
    %225 = arith.subf %224, %223 : vector<8x1xf32>
    %226 = arith.mulf %222, %225 : vector<8x1xf32>
    %227 = vector.broadcast %226 : vector<8x1xf32> to vector<8x16xf32>
    %228 = arith.mulf %213, %227 : vector<8x16xf32>
    %c0_104 = arith.constant 0 : index
    %c0_105 = arith.constant 0 : index
    %229 = vector.load %arg8[%c0_104, %c0_105] : memref<8x16xf32, #tpu.memory_space<vmem>>, vector<8x16xf32>
    tpu.vector_store %arg8[%c0_104, %c0_105], %228 {strides = array<i32>} : memref<8x16xf32, #tpu.memory_space<vmem>>, vector<8x16xf32>,
    %c0_i32_106 = arith.constant 0 : i32
    %230 = arith.addi %0, %c0_i32_106 : i32
    %231 = arith.index_cast %230 : i32 to index
    %232 = memref.load %arg1[%231] : memref<16xi32, #tpu.memory_space<smem>>
    %c0_i32_107 = arith.constant 0 : i32
    %c1_i32_108 = arith.constant 1 : i32
    %c0_i32_109 = arith.constant 0 : i32
    %233 = tpu.memref_slice %arg8[%c0_i32_107, %c0_i32_109] : memref<8x16xf32, #tpu.memory_space<vmem>> -> memref<1x16xf32, #tpu.memory_space<vmem>>
    %234 = tpu.memref_squeeze %233 : memref<1x16xf32, #tpu.memory_space<vmem>> -> memref<16xf32, #tpu.memory_space<vmem>>
    %c0_i32_110 = arith.constant 0 : i32
    %235 = tpu.memref_slice %arg6[%232, %c0_i32_110] : memref<32x16xf32, #tpu.memory_space<any>> -> memref<1x16xf32, #tpu.memory_space<any>>
    %236 = tpu.memref_squeeze %235 : memref<1x16xf32, #tpu.memory_space<any>> -> memref<16xf32, #tpu.memory_space<any>>
    %237 = tpu.memref_slice %arg9[%c1_i32_108] : memref<2x!tpu.dma_semaphore, #tpu.memory_space<semaphore_mem>> -> memref<1x!tpu.dma_semaphore, #tpu.memory_space<semaphore_mem>>
    %238 = tpu.memref_squeeze %237 : memref<1x!tpu.dma_semaphore, #tpu.memory_space<semaphore_mem>> -> memref<!tpu.dma_semaphore, #tpu.memory_space<semaphore_mem>>
    tpu.enqueue_dma source(%234 : memref<16xf32, #tpu.memory_space<vmem>>) target(%236 : memref<16xf32, #tpu.memory_space<any>>) target_semaphore(%238 : memref<!tpu.dma_semaphore, #tpu.memory_space<semaphore_mem>>)
    %c1_i32_111 = arith.constant 1 : i32
    %239 = arith.addi %0, %c1_i32_111 : i32
    %240 = arith.index_cast %239 : i32 to index
    %241 = memref.load %arg1[%240] : memref<16xi32, #tpu.memory_space<smem>>
    %c1_i32_112 = arith.constant 1 : i32
    %c1_i32_113 = arith.constant 1 : i32
    %c0_i32_114 = arith.constant 0 : i32
    %242 = tpu.memref_slice %arg8[%c1_i32_112, %c0_i32_114] : memref<8x16xf32, #tpu.memory_space<vmem>> -> memref<1x16xf32, #tpu.memory_space<vmem>>
    %243 = tpu.memref_squeeze %242 : memref<1x16xf32, #tpu.memory_space<vmem>> -> memref<16xf32, #tpu.memory_space<vmem>>
    %c0_i32_115 = arith.constant 0 : i32
    %244 = tpu.memref_slice %arg6[%241, %c0_i32_115] : memref<32x16xf32, #tpu.memory_space<any>> -> memref<1x16xf32, #tpu.memory_space<any>>
    %245 = tpu.memref_squeeze %244 : memref<1x16xf32, #tpu.memory_space<any>> -> memref<16xf32, #tpu.memory_space<any>>
    %246 = tpu.memref_slice %arg9[%c1_i32_113] : memref<2x!tpu.dma_semaphore, #tpu.memory_space<semaphore_mem>> -> memref<1x!tpu.dma_semaphore, #tpu.memory_space<semaphore_mem>>
    %247 = tpu.memref_squeeze %246 : memref<1x!tpu.dma_semaphore, #tpu.memory_space<semaphore_mem>> -> memref<!tpu.dma_semaphore, #tpu.memory_space<semaphore_mem>>
    tpu.enqueue_dma source(%243 : memref<16xf32, #tpu.memory_space<vmem>>) target(%245 : memref<16xf32, #tpu.memory_space<any>>) target_semaphore(%247 : memref<!tpu.dma_semaphore, #tpu.memory_space<semaphore_mem>>)
    %c2_i32_116 = arith.constant 2 : i32
    %248 = arith.addi %0, %c2_i32_116 : i32
    %249 = arith.index_cast %248 : i32 to index
    %250 = memref.load %arg1[%249] : memref<16xi32, #tpu.memory_space<smem>>
    %c2_i32_117 = arith.constant 2 : i32
    %c1_i32_118 = arith.constant 1 : i32
    %c0_i32_119 = arith.constant 0 : i32
    %251 = tpu.memref_slice %arg8[%c2_i32_117, %c0_i32_119] : memref<8x16xf32, #tpu.memory_space<vmem>> -> memref<1x16xf32, #tpu.memory_space<vmem>>
    %252 = tpu.memref_squeeze %251 : memref<1x16xf32, #tpu.memory_space<vmem>> -> memref<16xf32, #tpu.memory_space<vmem>>
    %c0_i32_120 = arith.constant 0 : i32
    %253 = tpu.memref_slice %arg6[%250, %c0_i32_120] : memref<32x16xf32, #tpu.memory_space<any>> -> memref<1x16xf32, #tpu.memory_space<any>>
    %254 = tpu.memref_squeeze %253 : memref<1x16xf32, #tpu.memory_space<any>> -> memref<16xf32, #tpu.memory_space<any>>
    %255 = tpu.memref_slice %arg9[%c1_i32_118] : memref<2x!tpu.dma_semaphore, #tpu.memory_space<semaphore_mem>> -> memref<1x!tpu.dma_semaphore, #tpu.memory_space<semaphore_mem>>
    %256 = tpu.memref_squeeze %255 : memref<1x!tpu.dma_semaphore, #tpu.memory_space<semaphore_mem>> -> memref<!tpu.dma_semaphore, #tpu.memory_space<semaphore_mem>>
    tpu.enqueue_dma source(%252 : memref<16xf32, #tpu.memory_space<vmem>>) target(%254 : memref<16xf32, #tpu.memory_space<any>>) target_semaphore(%256 : memref<!tpu.dma_semaphore, #tpu.memory_space<semaphore_mem>>)
    %c3_i32_121 = arith.constant 3 : i32
    %257 = arith.addi %0, %c3_i32_121 : i32
    %258 = arith.index_cast %257 : i32 to index
    %259 = memref.load %arg1[%258] : memref<16xi32, #tpu.memory_space<smem>>
    %c3_i32_122 = arith.constant 3 : i32
    %c1_i32_123 = arith.constant 1 : i32
    %c0_i32_124 = arith.constant 0 : i32
    %260 = tpu.memref_slice %arg8[%c3_i32_122, %c0_i32_124] : memref<8x16xf32, #tpu.memory_space<vmem>> -> memref<1x16xf32, #tpu.memory_space<vmem>>
    %261 = tpu.memref_squeeze %260 : memref<1x16xf32, #tpu.memory_space<vmem>> -> memref<16xf32, #tpu.memory_space<vmem>>
    %c0_i32_125 = arith.constant 0 : i32
    %262 = tpu.memref_slice %arg6[%259, %c0_i32_125] : memref<32x16xf32, #tpu.memory_space<any>> -> memref<1x16xf32, #tpu.memory_space<any>>
    %263 = tpu.memref_squeeze %262 : memref<1x16xf32, #tpu.memory_space<any>> -> memref<16xf32, #tpu.memory_space<any>>
    %264 = tpu.memref_slice %arg9[%c1_i32_123] : memref<2x!tpu.dma_semaphore, #tpu.memory_space<semaphore_mem>> -> memref<1x!tpu.dma_semaphore, #tpu.memory_space<semaphore_mem>>
    %265 = tpu.memref_squeeze %264 : memref<1x!tpu.dma_semaphore, #tpu.memory_space<semaphore_mem>> -> memref<!tpu.dma_semaphore, #tpu.memory_space<semaphore_mem>>
    tpu.enqueue_dma source(%261 : memref<16xf32, #tpu.memory_space<vmem>>) target(%263 : memref<16xf32, #tpu.memory_space<any>>) target_semaphore(%265 : memref<!tpu.dma_semaphore, #tpu.memory_space<semaphore_mem>>)
    %c4_i32_126 = arith.constant 4 : i32
    %266 = arith.addi %0, %c4_i32_126 : i32
    %267 = arith.index_cast %266 : i32 to index
    %268 = memref.load %arg1[%267] : memref<16xi32, #tpu.memory_space<smem>>
    %c4_i32_127 = arith.constant 4 : i32
    %c1_i32_128 = arith.constant 1 : i32
    %c0_i32_129 = arith.constant 0 : i32
    %269 = tpu.memref_slice %arg8[%c4_i32_127, %c0_i32_129] : memref<8x16xf32, #tpu.memory_space<vmem>> -> memref<1x16xf32, #tpu.memory_space<vmem>>
    %270 = tpu.memref_squeeze %269 : memref<1x16xf32, #tpu.memory_space<vmem>> -> memref<16xf32, #tpu.memory_space<vmem>>
    %c0_i32_130 = arith.constant 0 : i32
    %271 = tpu.memref_slice %arg6[%268, %c0_i32_130] : memref<32x16xf32, #tpu.memory_space<any>> -> memref<1x16xf32, #tpu.memory_space<any>>
    %272 = tpu.memref_squeeze %271 : memref<1x16xf32, #tpu.memory_space<any>> -> memref<16xf32, #tpu.memory_space<any>>
    %273 = tpu.memref_slice %arg9[%c1_i32_128] : memref<2x!tpu.dma_semaphore, #tpu.memory_space<semaphore_mem>> -> memref<1x!tpu.dma_semaphore, #tpu.memory_space<semaphore_mem>>
    %274 = tpu.memref_squeeze %273 : memref<1x!tpu.dma_semaphore, #tpu.memory_space<semaphore_mem>> -> memref<!tpu.dma_semaphore, #tpu.memory_space<semaphore_mem>>
    tpu.enqueue_dma source(%270 : memref<16xf32, #tpu.memory_space<vmem>>) target(%272 : memref<16xf32, #tpu.memory_space<any>>) target_semaphore(%274 : memref<!tpu.dma_semaphore, #tpu.memory_space<semaphore_mem>>)
    %c5_i32_131 = arith.constant 5 : i32
    %275 = arith.addi %0, %c5_i32_131 : i32
    %276 = arith.index_cast %275 : i32 to index
    %277 = memref.load %arg1[%276] : memref<16xi32, #tpu.memory_space<smem>>
    %c5_i32_132 = arith.constant 5 : i32
    %c1_i32_133 = arith.constant 1 : i32
    %c0_i32_134 = arith.constant 0 : i32
    %278 = tpu.memref_slice %arg8[%c5_i32_132, %c0_i32_134] : memref<8x16xf32, #tpu.memory_space<vmem>> -> memref<1x16xf32, #tpu.memory_space<vmem>>
    %279 = tpu.memref_squeeze %278 : memref<1x16xf32, #tpu.memory_space<vmem>> -> memref<16xf32, #tpu.memory_space<vmem>>
    %c0_i32_135 = arith.constant 0 : i32
    %280 = tpu.memref_slice %arg6[%277, %c0_i32_135] : memref<32x16xf32, #tpu.memory_space<any>> -> memref<1x16xf32, #tpu.memory_space<any>>
    %281 = tpu.memref_squeeze %280 : memref<1x16xf32, #tpu.memory_space<any>> -> memref<16xf32, #tpu.memory_space<any>>
    %282 = tpu.memref_slice %arg9[%c1_i32_133] : memref<2x!tpu.dma_semaphore, #tpu.memory_space<semaphore_mem>> -> memref<1x!tpu.dma_semaphore, #tpu.memory_space<semaphore_mem>>
    %283 = tpu.memref_squeeze %282 : memref<1x!tpu.dma_semaphore, #tpu.memory_space<semaphore_mem>> -> memref<!tpu.dma_semaphore, #tpu.memory_space<semaphore_mem>>
    tpu.enqueue_dma source(%279 : memref<16xf32, #tpu.memory_space<vmem>>) target(%281 : memref<16xf32, #tpu.memory_space<any>>) target_semaphore(%283 : memref<!tpu.dma_semaphore, #tpu.memory_space<semaphore_mem>>)
    %c6_i32_136 = arith.constant 6 : i32
    %284 = arith.addi %0, %c6_i32_136 : i32
    %285 = arith.index_cast %284 : i32 to index
    %286 = memref.load %arg1[%285] : memref<16xi32, #tpu.memory_space<smem>>
    %c6_i32_137 = arith.constant 6 : i32
    %c1_i32_138 = arith.constant 1 : i32
    %c0_i32_139 = arith.constant 0 : i32
    %287 = tpu.memref_slice %arg8[%c6_i32_137, %c0_i32_139] : memref<8x16xf32, #tpu.memory_space<vmem>> -> memref<1x16xf32, #tpu.memory_space<vmem>>
    %288 = tpu.memref_squeeze %287 : memref<1x16xf32, #tpu.memory_space<vmem>> -> memref<16xf32, #tpu.memory_space<vmem>>
    %c0_i32_140 = arith.constant 0 : i32
    %289 = tpu.memref_slice %arg6[%286, %c0_i32_140] : memref<32x16xf32, #tpu.memory_space<any>> -> memref<1x16xf32, #tpu.memory_space<any>>
    %290 = tpu.memref_squeeze %289 : memref<1x16xf32, #tpu.memory_space<any>> -> memref<16xf32, #tpu.memory_space<any>>
    %291 = tpu.memref_slice %arg9[%c1_i32_138] : memref<2x!tpu.dma_semaphore, #tpu.memory_space<semaphore_mem>> -> memref<1x!tpu.dma_semaphore, #tpu.memory_space<semaphore_mem>>
    %292 = tpu.memref_squeeze %291 : memref<1x!tpu.dma_semaphore, #tpu.memory_space<semaphore_mem>> -> memref<!tpu.dma_semaphore, #tpu.memory_space<semaphore_mem>>
    tpu.enqueue_dma source(%288 : memref<16xf32, #tpu.memory_space<vmem>>) target(%290 : memref<16xf32, #tpu.memory_space<any>>) target_semaphore(%292 : memref<!tpu.dma_semaphore, #tpu.memory_space<semaphore_mem>>)
    %c7_i32_141 = arith.constant 7 : i32
    %293 = arith.addi %0, %c7_i32_141 : i32
    %294 = arith.index_cast %293 : i32 to index
    %295 = memref.load %arg1[%294] : memref<16xi32, #tpu.memory_space<smem>>
    %c7_i32_142 = arith.constant 7 : i32
    %c1_i32_143 = arith.constant 1 : i32
    %c0_i32_144 = arith.constant 0 : i32
    %296 = tpu.memref_slice %arg8[%c7_i32_142, %c0_i32_144] : memref<8x16xf32, #tpu.memory_space<vmem>> -> memref<1x16xf32, #tpu.memory_space<vmem>>
    %297 = tpu.memref_squeeze %296 : memref<1x16xf32, #tpu.memory_space<vmem>> -> memref<16xf32, #tpu.memory_space<vmem>>
    %c0_i32_145 = arith.constant 0 : i32
    %298 = tpu.memref_slice %arg6[%295, %c0_i32_145] : memref<32x16xf32, #tpu.memory_space<any>> -> memref<1x16xf32, #tpu.memory_space<any>>
    %299 = tpu.memref_squeeze %298 : memref<1x16xf32, #tpu.memory_space<any>> -> memref<16xf32, #tpu.memory_space<any>>
    %300 = tpu.memref_slice %arg9[%c1_i32_143] : memref<2x!tpu.dma_semaphore, #tpu.memory_space<semaphore_mem>> -> memref<1x!tpu.dma_semaphore, #tpu.memory_space<semaphore_mem>>
    %301 = tpu.memref_squeeze %300 : memref<1x!tpu.dma_semaphore, #tpu.memory_space<semaphore_mem>> -> memref<!tpu.dma_semaphore, #tpu.memory_space<semaphore_mem>>
    tpu.enqueue_dma source(%297 : memref<16xf32, #tpu.memory_space<vmem>>) target(%299 : memref<16xf32, #tpu.memory_space<any>>) target_semaphore(%301 : memref<!tpu.dma_semaphore, #tpu.memory_space<semaphore_mem>>)
    %c0_i32_146 = arith.constant 0 : i32
    %c0_i32_147 = arith.constant 0 : i32
    %c1_i32_148 = arith.constant 1 : i32
    %c0_i32_149 = arith.constant 0 : i32
    %302 = tpu.memref_slice %arg8[%c0_i32_146, %c0_i32_149] : memref<8x16xf32, #tpu.memory_space<vmem>> -> memref<1x16xf32, #tpu.memory_space<vmem>>
    %303 = tpu.memref_squeeze %302 : memref<1x16xf32, #tpu.memory_space<vmem>> -> memref<16xf32, #tpu.memory_space<vmem>>
    %c0_i32_150 = arith.constant 0 : i32
    %304 = tpu.memref_slice %arg6[%c0_i32_147, %c0_i32_150] : memref<32x16xf32, #tpu.memory_space<any>> -> memref<1x16xf32, #tpu.memory_space<any>>
    %305 = tpu.memref_squeeze %304 : memref<1x16xf32, #tpu.memory_space<any>> -> memref<16xf32, #tpu.memory_space<any>>
    %306 = tpu.memref_slice %arg9[%c1_i32_148] : memref<2x!tpu.dma_semaphore, #tpu.memory_space<semaphore_mem>> -> memref<1x!tpu.dma_semaphore, #tpu.memory_space<semaphore_mem>>
    %307 = tpu.memref_squeeze %306 : memref<1x!tpu.dma_semaphore, #tpu.memory_space<semaphore_mem>> -> memref<!tpu.dma_semaphore, #tpu.memory_space<semaphore_mem>>
    tpu.wait_dma2 semaphore(%307 : memref<!tpu.dma_semaphore, #tpu.memory_space<semaphore_mem>>) src(%303 : memref<16xf32, #tpu.memory_space<vmem>>) dst(%305 : memref<16xf32, #tpu.memory_space<any>>)
    %c0_i32_151 = arith.constant 0 : i32
    %c0_i32_152 = arith.constant 0 : i32
    %c1_i32_153 = arith.constant 1 : i32
    %c0_i32_154 = arith.constant 0 : i32
    %308 = tpu.memref_slice %arg8[%c0_i32_151, %c0_i32_154] : memref<8x16xf32, #tpu.memory_space<vmem>> -> memref<1x16xf32, #tpu.memory_space<vmem>>
    %309 = tpu.memref_squeeze %308 : memref<1x16xf32, #tpu.memory_space<vmem>> -> memref<16xf32, #tpu.memory_space<vmem>>
    %c0_i32_155 = arith.constant 0 : i32
    %310 = tpu.memref_slice %arg6[%c0_i32_152, %c0_i32_155] : memref<32x16xf32, #tpu.memory_space<any>> -> memref<1x16xf32, #tpu.memory_space<any>>
    %311 = tpu.memref_squeeze %310 : memref<1x16xf32, #tpu.memory_space<any>> -> memref<16xf32, #tpu.memory_space<any>>
    %312 = tpu.memref_slice %arg9[%c1_i32_153] : memref<2x!tpu.dma_semaphore, #tpu.memory_space<semaphore_mem>> -> memref<1x!tpu.dma_semaphore, #tpu.memory_space<semaphore_mem>>
    %313 = tpu.memref_squeeze %312 : memref<1x!tpu.dma_semaphore, #tpu.memory_space<semaphore_mem>> -> memref<!tpu.dma_semaphore, #tpu.memory_space<semaphore_mem>>
    tpu.wait_dma2 semaphore(%313 : memref<!tpu.dma_semaphore, #tpu.memory_space<semaphore_mem>>) src(%309 : memref<16xf32, #tpu.memory_space<vmem>>) dst(%311 : memref<16xf32, #tpu.memory_space<any>>)
    %c0_i32_156 = arith.constant 0 : i32
    %c0_i32_157 = arith.constant 0 : i32
    %c1_i32_158 = arith.constant 1 : i32
    %c0_i32_159 = arith.constant 0 : i32
    %314 = tpu.memref_slice %arg8[%c0_i32_156, %c0_i32_159] : memref<8x16xf32, #tpu.memory_space<vmem>> -> memref<1x16xf32, #tpu.memory_space<vmem>>
    %315 = tpu.memref_squeeze %314 : memref<1x16xf32, #tpu.memory_space<vmem>> -> memref<16xf32, #tpu.memory_space<vmem>>
    %c0_i32_160 = arith.constant 0 : i32
    %316 = tpu.memref_slice %arg6[%c0_i32_157, %c0_i32_160] : memref<32x16xf32, #tpu.memory_space<any>> -> memref<1x16xf32, #tpu.memory_space<any>>
    %317 = tpu.memref_squeeze %316 : memref<1x16xf32, #tpu.memory_space<any>> -> memref<16xf32, #tpu.memory_space<any>>
    %318 = tpu.memref_slice %arg9[%c1_i32_158] : memref<2x!tpu.dma_semaphore, #tpu.memory_space<semaphore_mem>> -> memref<1x!tpu.dma_semaphore, #tpu.memory_space<semaphore_mem>>
    %319 = tpu.memref_squeeze %318 : memref<1x!tpu.dma_semaphore, #tpu.memory_space<semaphore_mem>> -> memref<!tpu.dma_semaphore, #tpu.memory_space<semaphore_mem>>
    tpu.wait_dma2 semaphore(%319 : memref<!tpu.dma_semaphore, #tpu.memory_space<semaphore_mem>>) src(%315 : memref<16xf32, #tpu.memory_space<vmem>>) dst(%317 : memref<16xf32, #tpu.memory_space<any>>)
    %c0_i32_161 = arith.constant 0 : i32
    %c0_i32_162 = arith.constant 0 : i32
    %c1_i32_163 = arith.constant 1 : i32
    %c0_i32_164 = arith.constant 0 : i32
    %320 = tpu.memref_slice %arg8[%c0_i32_161, %c0_i32_164] : memref<8x16xf32, #tpu.memory_space<vmem>> -> memref<1x16xf32, #tpu.memory_space<vmem>>
    %321 = tpu.memref_squeeze %320 : memref<1x16xf32, #tpu.memory_space<vmem>> -> memref<16xf32, #tpu.memory_space<vmem>>
    %c0_i32_165 = arith.constant 0 : i32
    %322 = tpu.memref_slice %arg6[%c0_i32_162, %c0_i32_165] : memref<32x16xf32, #tpu.memory_space<any>> -> memref<1x16xf32, #tpu.memory_space<any>>
    %323 = tpu.memref_squeeze %322 : memref<1x16xf32, #tpu.memory_space<any>> -> memref<16xf32, #tpu.memory_space<any>>
    %324 = tpu.memref_slice %arg9[%c1_i32_163] : memref<2x!tpu.dma_semaphore, #tpu.memory_space<semaphore_mem>> -> memref<1x!tpu.dma_semaphore, #tpu.memory_space<semaphore_mem>>
    %325 = tpu.memref_squeeze %324 : memref<1x!tpu.dma_semaphore, #tpu.memory_space<semaphore_mem>> -> memref<!tpu.dma_semaphore, #tpu.memory_space<semaphore_mem>>
    tpu.wait_dma2 semaphore(%325 : memref<!tpu.dma_semaphore, #tpu.memory_space<semaphore_mem>>) src(%321 : memref<16xf32, #tpu.memory_space<vmem>>) dst(%323 : memref<16xf32, #tpu.memory_space<any>>)
    %c0_i32_166 = arith.constant 0 : i32
    %c0_i32_167 = arith.constant 0 : i32
    %c1_i32_168 = arith.constant 1 : i32
    %c0_i32_169 = arith.constant 0 : i32
    %326 = tpu.memref_slice %arg8[%c0_i32_166, %c0_i32_169] : memref<8x16xf32, #tpu.memory_space<vmem>> -> memref<1x16xf32, #tpu.memory_space<vmem>>
    %327 = tpu.memref_squeeze %326 : memref<1x16xf32, #tpu.memory_space<vmem>> -> memref<16xf32, #tpu.memory_space<vmem>>
    %c0_i32_170 = arith.constant 0 : i32
    %328 = tpu.memref_slice %arg6[%c0_i32_167, %c0_i32_170] : memref<32x16xf32, #tpu.memory_space<any>> -> memref<1x16xf32, #tpu.memory_space<any>>
    %329 = tpu.memref_squeeze %328 : memref<1x16xf32, #tpu.memory_space<any>> -> memref<16xf32, #tpu.memory_space<any>>
    %330 = tpu.memref_slice %arg9[%c1_i32_168] : memref<2x!tpu.dma_semaphore, #tpu.memory_space<semaphore_mem>> -> memref<1x!tpu.dma_semaphore, #tpu.memory_space<semaphore_mem>>
    %331 = tpu.memref_squeeze %330 : memref<1x!tpu.dma_semaphore, #tpu.memory_space<semaphore_mem>> -> memref<!tpu.dma_semaphore, #tpu.memory_space<semaphore_mem>>
    tpu.wait_dma2 semaphore(%331 : memref<!tpu.dma_semaphore, #tpu.memory_space<semaphore_mem>>) src(%327 : memref<16xf32, #tpu.memory_space<vmem>>) dst(%329 : memref<16xf32, #tpu.memory_space<any>>)
    %c0_i32_171 = arith.constant 0 : i32
    %c0_i32_172 = arith.constant 0 : i32
    %c1_i32_173 = arith.constant 1 : i32
    %c0_i32_174 = arith.constant 0 : i32
    %332 = tpu.memref_slice %arg8[%c0_i32_171, %c0_i32_174] : memref<8x16xf32, #tpu.memory_space<vmem>> -> memref<1x16xf32, #tpu.memory_space<vmem>>
    %333 = tpu.memref_squeeze %332 : memref<1x16xf32, #tpu.memory_space<vmem>> -> memref<16xf32, #tpu.memory_space<vmem>>
    %c0_i32_175 = arith.constant 0 : i32
    %334 = tpu.memref_slice %arg6[%c0_i32_172, %c0_i32_175] : memref<32x16xf32, #tpu.memory_space<any>> -> memref<1x16xf32, #tpu.memory_space<any>>
    %335 = tpu.memref_squeeze %334 : memref<1x16xf32, #tpu.memory_space<any>> -> memref<16xf32, #tpu.memory_space<any>>
    %336 = tpu.memref_slice %arg9[%c1_i32_173] : memref<2x!tpu.dma_semaphore, #tpu.memory_space<semaphore_mem>> -> memref<1x!tpu.dma_semaphore, #tpu.memory_space<semaphore_mem>>
    %337 = tpu.memref_squeeze %336 : memref<1x!tpu.dma_semaphore, #tpu.memory_space<semaphore_mem>> -> memref<!tpu.dma_semaphore, #tpu.memory_space<semaphore_mem>>
    tpu.wait_dma2 semaphore(%337 : memref<!tpu.dma_semaphore, #tpu.memory_space<semaphore_mem>>) src(%333 : memref<16xf32, #tpu.memory_space<vmem>>) dst(%335 : memref<16xf32, #tpu.memory_space<any>>)
    %c0_i32_176 = arith.constant 0 : i32
    %c0_i32_177 = arith.constant 0 : i32
    %c1_i32_178 = arith.constant 1 : i32
    %c0_i32_179 = arith.constant 0 : i32
    %338 = tpu.memref_slice %arg8[%c0_i32_176, %c0_i32_179] : memref<8x16xf32, #tpu.memory_space<vmem>> -> memref<1x16xf32, #tpu.memory_space<vmem>>
    %339 = tpu.memref_squeeze %338 : memref<1x16xf32, #tpu.memory_space<vmem>> -> memref<16xf32, #tpu.memory_space<vmem>>
    %c0_i32_180 = arith.constant 0 : i32
    %340 = tpu.memref_slice %arg6[%c0_i32_177, %c0_i32_180] : memref<32x16xf32, #tpu.memory_space<any>> -> memref<1x16xf32, #tpu.memory_space<any>>
    %341 = tpu.memref_squeeze %340 : memref<1x16xf32, #tpu.memory_space<any>> -> memref<16xf32, #tpu.memory_space<any>>
    %342 = tpu.memref_slice %arg9[%c1_i32_178] : memref<2x!tpu.dma_semaphore, #tpu.memory_space<semaphore_mem>> -> memref<1x!tpu.dma_semaphore, #tpu.memory_space<semaphore_mem>>
    %343 = tpu.memref_squeeze %342 : memref<1x!tpu.dma_semaphore, #tpu.memory_space<semaphore_mem>> -> memref<!tpu.dma_semaphore, #tpu.memory_space<semaphore_mem>>
    tpu.wait_dma2 semaphore(%343 : memref<!tpu.dma_semaphore, #tpu.memory_space<semaphore_mem>>) src(%339 : memref<16xf32, #tpu.memory_space<vmem>>) dst(%341 : memref<16xf32, #tpu.memory_space<any>>)
    %c0_i32_181 = arith.constant 0 : i32
    %c0_i32_182 = arith.constant 0 : i32
    %c1_i32_183 = arith.constant 1 : i32
    %c0_i32_184 = arith.constant 0 : i32
    %344 = tpu.memref_slice %arg8[%c0_i32_181, %c0_i32_184] : memref<8x16xf32, #tpu.memory_space<vmem>> -> memref<1x16xf32, #tpu.memory_space<vmem>>
    %345 = tpu.memref_squeeze %344 : memref<1x16xf32, #tpu.memory_space<vmem>> -> memref<16xf32, #tpu.memory_space<vmem>>
    %c0_i32_185 = arith.constant 0 : i32
    %346 = tpu.memref_slice %arg6[%c0_i32_182, %c0_i32_185] : memref<32x16xf32, #tpu.memory_space<any>> -> memref<1x16xf32, #tpu.memory_space<any>>
    %347 = tpu.memref_squeeze %346 : memref<1x16xf32, #tpu.memory_space<any>> -> memref<16xf32, #tpu.memory_space<any>>
    %348 = tpu.memref_slice %arg9[%c1_i32_183] : memref<2x!tpu.dma_semaphore, #tpu.memory_space<semaphore_mem>> -> memref<1x!tpu.dma_semaphore, #tpu.memory_space<semaphore_mem>>
    %349 = tpu.memref_squeeze %348 : memref<1x!tpu.dma_semaphore, #tpu.memory_space<semaphore_mem>> -> memref<!tpu.dma_semaphore, #tpu.memory_space<semaphore_mem>>
    tpu.wait_dma2 semaphore(%349 : memref<!tpu.dma_semaphore, #tpu.memory_space<semaphore_mem>>) src(%345 : memref<16xf32, #tpu.memory_space<vmem>>) dst(%347 : memref<16xf32, #tpu.memory_space<any>>)
    return
  }
  func.func @transform_0(%arg0: i32, %arg1: memref<16xi32, #tpu.memory_space<smem>>) -> (i32, i32) {
    %c0_i32 = arith.constant 0 : i32
    %c0_i32_0 = arith.constant 0 : i32
    return %arg0, %c0_i32 : i32, i32
  }
  func.func @transform_1(%arg0: i32, %arg1: memref<16xi32, #tpu.memory_space<smem>>) -> (i32, i32) {
    %c0_i32 = arith.constant 0 : i32
    %c0_i32_0 = arith.constant 0 : i32
    return %arg0, %c0_i32 : i32, i32
  }
  func.func @transform_3(%arg0: i32, %arg1: memref<16xi32, #tpu.memory_space<smem>>) -> (i32, i32, i32) {
    %c0_i32 = arith.constant 0 : i32
    %c0_i32_0 = arith.constant 0 : i32
    %c0_i32_1 = arith.constant 0 : i32
    return %arg0, %c0_i32, %c0_i32_0 : i32, i32, i32
  }
}

</mosaic_0001>

<llo_original>
// kernel: corr_loss.1
$region0: #{corr_loss.1}
  #allocation0 [shape = 'u32[]', space=smem, size = 0x4, offset = 0x4, fixed_abs, tag = 'smem constant byte address 0x4 - core index']
  #allocation1 [shape = 'u32[144,128]{1,0:T(1,128)}', space=vmem, size = 0x12000, scoped, tag = 'internal scratch']
  #allocation2 [shape = 'f32[8,16]{1,0:T(8,128)}', space=vmem, size = 0x1000, scoped, tag = 'scratch operand']
  #allocation3 [shape = 'f32[8,16]{1,0:T(8,128)}', space=vmem, size = 0x1000, scoped, tag = 'scratch operand']
  #allocation4 [shape = 's32[2]{0}', space=sflag, size = 0x8, scoped, tag = 'scratch operand']
  #allocation5 [shape = 's32[1]{0}', space=sflag, size = 0x4, scoped, tag = 'scoped memory for corr_loss.1']
  #allocation6 [shape = 'u8[512]{0}', space=smem, size = 0x200, scoped, tag = 'prefetched SMEM operand 0']
  #allocation7 [shape = 's32[]', space=sflag, size = 0x4, offset = 0, fixed_abs, tag = 'sflag constant byte address 0x0 - dummy sync flag']
  #allocation8 [shape = 's32[]', space=sflag, size = 0x4, offset = 0, fixed_abs, tag = 'sflag constant byte address 0x0 - dummy sync flag']
  #allocation9 [shape = 's32[]', space=sflag, size = 0x4, offset = 0, fixed_abs, tag = 'sflag constant byte address 0x0 - dummy sync flag']
  #allocation10 [shape = 's32[]', space=sflag, size = 0x4, offset = 0, fixed_abs, tag = 'sflag constant byte address 0x0 - dummy sync flag']
  #allocation11 [shape = 's32[]', space=sflag, size = 0x4, offset = 0, fixed_abs, tag = 'sflag constant byte address 0x0 - dummy sync flag']
  #allocation12 [shape = 's32[]', space=sflag, size = 0x4, offset = 0, fixed_abs, tag = 'sflag constant byte address 0x0 - dummy sync flag']
  #allocation13 [shape = 's32[]', space=sflag, size = 0x4, offset = 0, fixed_abs, tag = 'sflag constant byte address 0x0 - dummy sync flag']
  #allocation14 [shape = 's32[]', space=sflag, size = 0x4, offset = 0, fixed_abs, tag = 'sflag constant byte address 0x0 - dummy sync flag']
  #allocation15 [shape = 's32[]', space=sflag, size = 0x4, offset = 0, fixed_abs, tag = 'sflag constant byte address 0x0 - dummy sync flag']
  #allocation16 [shape = 's32[]', space=sflag, size = 0x4, offset = 0, fixed_abs, tag = 'sflag constant byte address 0x0 - dummy sync flag']
  #allocation17 [shape = 's32[]', space=sflag, size = 0x4, offset = 0, fixed_abs, tag = 'sflag constant byte address 0x0 - dummy sync flag']
  #allocation18 [shape = 's32[]', space=sflag, size = 0x4, offset = 0, fixed_abs, tag = 'sflag constant byte address 0x0 - dummy sync flag']
  #allocation19 [shape = 's32[]', space=sflag, size = 0x4, offset = 0, fixed_abs, tag = 'sflag constant byte address 0x0 - dummy sync flag']
  #allocation20 [shape = 's32[]', space=sflag, size = 0x4, offset = 0, fixed_abs, tag = 'sflag constant byte address 0x0 - dummy sync flag']
  #allocation21 [shape = 's32[]', space=sflag, size = 0x4, offset = 0, fixed_abs, tag = 'sflag constant byte address 0x0 - dummy sync flag']
  #allocation22 [shape = 's32[]', space=sflag, size = 0x4, offset = 0, fixed_abs, tag = 'sflag constant byte address 0x0 - dummy sync flag']
  %s0 = inlined_call_operand.vmem [shape: s32[16], index: 0, kind: input, shape index: {}]
  %s1 = inlined_call_operand.vmem [shape: f32[16,16], index: 1, kind: input, shape index: {}]
  %s2 = inlined_call_operand.vmem [shape: f32[16,16], index: 2, kind: input, shape index: {}]
  %s3 = inlined_call_operand.vmem [shape: f32[32,16], index: 3, kind: input, shape index: {}, may-alias: {3,5}]
  %s4 = inlined_call_operand.vmem [shape: f32[2,8,128], index: 4, kind: output, shape index: {0}]
  %s5 = inlined_call_operand.vmem [shape: f32[32,16], index: 5, kind: output, shape index: {1}, may-alias: {3,5}]
  %6 = xla_tuple %s4, %s5
  %s7 = sld [smem:[#allocation0]]
  $region521: #{corr_loss.1} parent=0
    _
  %s9 = ssub.s32 1, %s7
  %s10 = scalar_select 0, %s9, %s7
  %s11 = sshll.u32 %s0, 4
  %s12 = int_to_ptr.vmem [resolvable:$true] %s11
  %14 = dma.vmem_to_smem %s12, 16, [#allocation6], [#allocation5]
  %15 = dma.done [#allocation5], 16
  %16 = sfence
  loop: start=0, step=1, limit=4
  $region2: #{corr_loss.1} parent=0 // loop_pre_header
    _
  $region3: #{corr_loss.1} parent=0 // loop_header
    %s18 = sphi 0, %s22
    %p19 = scmp.ge.s32.totalorder %s18, 4
    %s28 = sphi 0, %s30
    %s31 = sphi 0, %s28
    %s32 = sphi 0, %s31
    %s48 = sphi 0, %s32
    %s54 = sphi 0, %s56
    %s57 = sphi 0, %s54
    %s58 = sphi 0, %s57
    %s74 = sphi 0, %s58
    %s80 = sphi 0, %s82
    %s83 = sphi 0, %s80
    %s84 = sphi 0, %s83
    %s100 = sphi 0, %s84
  $region4: #{corr_loss.1} parent=0 // loop_header_branch
    %21 = sbr.rel (%p19) target = $region8
  $region5: #{corr_loss.1} parent=0 // loop_body
    %s23 = ssub.s32 %s18, 1
    %s24 = ssub.s32 %s18, 2
    %s25 = sadd.s32 %s18, 1
    %s26 = ssub.s32 %s18, %s25
    %p27 = scmp.eq.s32.totalorder %s26, 0
    %s29 = sadd.s32 %s28, 1
    %s30 = scalar_select %p27, %s28, %s29
    %p33 = pneg %p27
    %p34 = scmp.eq.s32.totalorder %s18, 1
    %p35 = por %p33, %p34
    %p36 = scmp.ne.s32.totalorder %s28, %s31
    %p37 = scmp.eq.s32.totalorder %s18, 0
    %p38 = por %p36, %p37
    %p39 = scmp.ne.s32.totalorder %s28, %s31
    %p40 = scmp.eq.s32.totalorder %s23, 1
    %p41 = por %p39, %p40
    %p42 = scmp.ne.s32.totalorder %s31, %s32
    %p43 = scmp.eq.s32.totalorder %s23, 0
    %p44 = por %p42, %p43
    %p45 = scmp.ne.s32.totalorder %s31, %s32
    %p46 = scmp.eq.s32.totalorder %s24, 1
    %p47 = por %p45, %p46
    %p49 = scmp.ne.s32.totalorder %s32, %s48
    %p50 = scmp.eq.s32.totalorder %s24, 0
    %p51 = por %p49, %p50
    %s52 = ssub.s32 %s18, %s25
    %p53 = scmp.eq.s32.totalorder %s52, 0
    %s55 = sadd.s32 %s54, 1
    %s56 = scalar_select %p53, %s54, %s55
    %p59 = pneg %p53
    %p60 = scmp.eq.s32.totalorder %s18, 1
    %p61 = por %p59, %p60
    %p62 = scmp.ne.s32.totalorder %s54, %s57
    %p63 = scmp.eq.s32.totalorder %s18, 0
    %p64 = por %p62, %p63
    %p65 = scmp.ne.s32.totalorder %s54, %s57
    %p66 = scmp.eq.s32.totalorder %s23, 1
    %p67 = por %p65, %p66
    %p68 = scmp.ne.s32.totalorder %s57, %s58
    %p69 = scmp.eq.s32.totalorder %s23, 0
    %p70 = por %p68, %p69
    %p71 = scmp.ne.s32.totalorder %s57, %s58
    %p72 = scmp.eq.s32.totalorder %s24, 1
    %p73 = por %p71, %p72
    %p75 = scmp.ne.s32.totalorder %s58, %s74
    %p76 = scmp.eq.s32.totalorder %s24, 0
    %p77 = por %p75, %p76
    %s78 = ssub.s32 %s18, %s25
    %p79 = scmp.eq.s32.totalorder %s78, 0
    %s81 = sadd.s32 %s80, 1
    %s82 = scalar_select %p79, %s80, %s81
    %p85 = pneg %p79
    %p86 = scmp.eq.s32.totalorder %s18, 1
    %p87 = por %p85, %p86
    %p88 = scmp.ne.s32.totalorder %s80, %s83
    %p89 = scmp.eq.s32.totalorder %s18, 0
    %p90 = por %p88, %p89
    %p91 = scmp.ne.s32.totalorder %s80, %s83
    %p92 = scmp.eq.s32.totalorder %s23, 1
    %p93 = por %p91, %p92
    %p94 = scmp.ne.s32.totalorder %s83, %s84
    %p95 = scmp.eq.s32.totalorder %s23, 0
    %p96 = por %p94, %p95
    %p97 = scmp.ne.s32.totalorder %s83, %s84
    %p98 = scmp.eq.s32.totalorder %s24, 1
    %p99 = por %p97, %p98
    %p101 = scmp.ne.s32.totalorder %s84, %s100
    %p102 = scmp.eq.s32.totalorder %s24, 0
    %p103 = por %p101, %p102
    %p104 = scmp.le.s32.totalorder 1, %s18
    %p105 = scmp.lt.s32.totalorder %s18, 3
    %p106 = pnand %p104, %p105
    %p107 = pneg %p106
    // Predicated region
    $region9: #{corr_loss.1} parent=5 // pred_check
      _
    $region10: #{corr_loss.1} parent=5 // pred_check_branch
      %109 = sbr.rel (%p106) target = $region12
    $region11: #{corr_loss.1} parent=5 // pred_region
      %s110 = ssub.s32 %s18, 1
    $region12: #{corr_loss.1} parent=5 // pred_fallthru
      _
    %p111 = scmp.lt.s32.totalorder %s18, 2
    // Predicated region
    $region13: #{corr_loss.1} parent=5 // pred_check
      %p112 = pneg %p111
    $region14: #{corr_loss.1} parent=5 // pred_check_branch
      %114 = sbr.rel (%p112) target = $region16
    $region15: #{corr_loss.1} parent=5 // pred_region
      // Predicated region
      $region17: #{corr_loss.1} parent=15 // pred_check
        %p115 = pneg %p38
      $region18: #{corr_loss.1} parent=15 // pred_check_branch
        %117 = sbr.rel (%p115) target = $region20
      $region19: #{corr_loss.1} parent=15 // pred_region
        %p118 = scmp.lt.s32.totalorder %s18, 1
        %s119 = scalar_select %p118, %s18, 1
        %s120 = smul.addr %s119, 8
        %s121 = scalar_lea.vmem %s1, %s120
      $region20: #{corr_loss.1} parent=15 // pred_fallthru
        _
      // Predicated region
      $region21: #{corr_loss.1} parent=15 // pred_check
        %p122 = pneg %p64
      $region22: #{corr_loss.1} parent=15 // pred_check_branch
        %124 = sbr.rel (%p122) target = $region24
      $region23: #{corr_loss.1} parent=15 // pred_region
        %p125 = scmp.lt.s32.totalorder %s18, 1
        %s126 = scalar_select %p125, %s18, 1
        %s127 = smul.addr %s126, 8
        %s128 = scalar_lea.vmem %s2, %s127
      $region24: #{corr_loss.1} parent=15 // pred_fallthru
        _
    $region16: #{corr_loss.1} parent=5 // pred_fallthru
      _
    %p129 = scmp.le.s32.totalorder 1, %s18
    %p130 = scmp.lt.s32.totalorder %s18, 3
    %p131 = pnand %p129, %p130
    %p132 = pneg %p131
    // Predicated region
    $region25: #{corr_loss.1} parent=5 // pred_check
      _
    $region26: #{corr_loss.1} parent=5 // pred_check_branch
      %134 = sbr.rel (%p131) target = $region28
    $region27: #{corr_loss.1} parent=5 // pred_region
      %s135 = ssub.s32 %s18, 1
      %p136 = scmp.lt.s32.totalorder %s23, 1
      %s137 = scalar_select %p136, %s23, 1
      %s138 = smul.addr %s137, 8
      %s139 = scalar_lea.vmem %s1, %s138
      %p140 = pneg %p44
      %p141 = pneg %p41
      %p142 = scmp.lt.s32.totalorder %s23, 1
      %s143 = scalar_select %p142, %s23, 1
      %s144 = smul.addr %s143, 8
      %s145 = scalar_lea.vmem %s2, %s144
      %p146 = pneg %p70
      %p147 = pneg %p67
      %p148 = pneg %p96
      %p149 = pneg %p93
      %p150 = scmp.lt.s32.totalorder %s23, 1
      %s151 = scalar_select %p150, %s23, 1
      %s152 = smul.addr %s151, 8
      %s153 = scalar_lea.vmem %s4, %s152
      %p154 = scmp.lt.s32.totalorder %s23, 1
      %s155 = scalar_select %p154, %s23, 1
      %s156 = smul.addr %s155, 8
      %s157 = scalar_lea.vmem %s1, %s156
      %p158 = scmp.lt.s32.totalorder %s23, 1
      %s159 = scalar_select %p158, %s23, 1
      %s160 = smul.addr %s159, 8
      %s161 = scalar_lea.vmem %s2, %s160
      %p162 = scmp.lt.s32.totalorder %s23, 1
      %s163 = scalar_select %p162, %s23, 1
      %s164 = smul.addr %s163, 8
      %s165 = scalar_lea.vmem %s4, %s164
      %s166 = smul.u32 %s23, 8
      %s167 = sld [smem:[#allocation6 + %s166]]
      %s168 = scalar_lea.vmem %s3, %s167
      %p170 = scmp.lt.u32.totalorder 1, 8
      %p171 = pneg %p170
      // Predicated region
      $region29: #{corr_loss.1} parent=27 // pred_check
        _
      $region30: #{corr_loss.1} parent=27 // pred_check_branch
        %173 = sbr.rel (%p170) target = $region32
      $region31: #{corr_loss.1} parent=27 // pred_region
        %s189 = sand.u32 1, 7
        %p190 = scmp.eq.s32.totalorder %s189, 0
        %p191 = pneg %p190
        // Predicated region
        $region44: #{corr_loss.1} parent=31 // pred_check
          _
        $region45: #{corr_loss.1} parent=31 // pred_check_branch
          %193 = sbr.rel (%p190) target = $region47
        $region46: #{corr_loss.1} parent=31 // pred_region
          %s194 = sand.u32 1, 7
          %s195 = ssub.s32 1, %s194
          %s196 = scalar_lea.vmem %s168, %s195
          %s197 = ssub.s32 1, %s194
          %s198 = scalar_lea.vmem [#allocation2], %s197
          %s199 = sshll.u32 1, %s194
          %s200 = ssub.s32 %s199, 1
          loop: start=0, step=1, limit=1
          $region48: #{corr_loss.1} parent=46 // loop_pre_header
            _
          $region49: #{corr_loss.1} parent=46 // loop_header
            %s202 = sphi 0, %s206
            %p203 = scmp.ge.s32.totalorder %s202, 1
            %s207 = sphi %s196, %s196
            %s208 = sphi %s198, %s198
          $region50: #{corr_loss.1} parent=46 // loop_header_branch
            %205 = sbr.rel (%p203) target = $region54
          $region51: #{corr_loss.1} parent=46 // loop_body
            %v209 = vld [vmem:[%s207] sm:%s200]
            %210 = vst [vmem:[%s208] sm:%s200] %v209
          $region52: #{corr_loss.1} parent=46 // loop_footer
            %s206 = sadd.s32 1, %s202
          $region53: #{corr_loss.1} parent=46 // loop_footer_branch
            %201 = sbr.rel target = $region49
          $region54: #{corr_loss.1} parent=46 // loop_exit
            _
        $region47: #{corr_loss.1} parent=31 // pred_fallthru
          _
      $region32: #{corr_loss.1} parent=27 // pred_fallthru
        _
      // Predicated region
      $region33: #{corr_loss.1} parent=27 // pred_check
        %p174 = pneg %p170
      $region34: #{corr_loss.1} parent=27 // pred_check_branch
        %176 = sbr.rel (%p174) target = $region36
      $region35: #{corr_loss.1} parent=27 // pred_region
        %s177 = sshll.u32 1, 1
        %s178 = ssub.s32 %s177, 1
        loop: start=0, step=1, limit=1
        $region37: #{corr_loss.1} parent=35 // loop_pre_header
          _
        $region38: #{corr_loss.1} parent=35 // loop_header
          %s180 = sphi 0, %s184
          %p181 = scmp.ge.s32.totalorder %s180, 1
          %s185 = sphi %s168, %s168
          %s186 = sphi [#allocation2], [#allocation2]
        $region39: #{corr_loss.1} parent=35 // loop_header_branch
          %183 = sbr.rel (%p181) target = $region43
        $region40: #{corr_loss.1} parent=35 // loop_body
          %v187 = vld [vmem:[%s185] sm:%s178]
          %188 = vst [vmem:[%s186] sm:%s178] %v187
        $region41: #{corr_loss.1} parent=35 // loop_footer
          %s184 = sadd.s32 1, %s180
        $region42: #{corr_loss.1} parent=35 // loop_footer_branch
          %179 = sbr.rel target = $region38
        $region43: #{corr_loss.1} parent=35 // loop_exit
          _
      $region36: #{corr_loss.1} parent=27 // pred_fallthru
        _
      // Predicated region
      $region55: #{corr_loss.1} parent=27 // pred_check
        _
      $region56: #{corr_loss.1} parent=27 // pred_check_branch
        %213 = sbr.rel (0) target = $region58
      $region57: #{corr_loss.1} parent=27 // pred_region
        %214 = vsyncadd [#allocation4], 16
      $region58: #{corr_loss.1} parent=27 // pred_fallthru
        _
      %s215 = sadd.s32 %s166, 1
      %s216 = sld [smem:[#allocation6 + %s215]]
      %s217 = scalar_lea.vmem %s3, %s216
      %s218 = scalar_lea.vmem [#allocation2], 1
      %p220 = scmp.lt.u32.totalorder 1, 8
      %p221 = pneg %p220
      // Predicated region
      $region59: #{corr_loss.1} parent=27 // pred_check
        _
      $region60: #{corr_loss.1} parent=27 // pred_check_branch
        %223 = sbr.rel (%p220) target = $region62
      $region61: #{corr_loss.1} parent=27 // pred_region
        %s239 = sand.u32 1, 7
        %p240 = scmp.eq.s32.totalorder %s239, 0
        %p241 = pneg %p240
        // Predicated region
        $region74: #{corr_loss.1} parent=61 // pred_check
          _
        $region75: #{corr_loss.1} parent=61 // pred_check_branch
          %243 = sbr.rel (%p240) target = $region77
        $region76: #{corr_loss.1} parent=61 // pred_region
          %s244 = sand.u32 1, 7
          %s245 = ssub.s32 1, %s244
          %s246 = scalar_lea.vmem %s217, %s245
          %s247 = ssub.s32 1, %s244
          %s248 = scalar_lea.vmem %s218, %s247 [#allocation2]
          %s249 = sshll.u32 1, %s244
          %s250 = ssub.s32 %s249, 1
          loop: start=0, step=1, limit=1
          $region78: #{corr_loss.1} parent=76 // loop_pre_header
            _
          $region79: #{corr_loss.1} parent=76 // loop_header
            %s252 = sphi 0, %s256
            %p253 = scmp.ge.s32.totalorder %s252, 1
            %s257 = sphi %s246, %s246
            %s258 = sphi %s248, %s248
          $region80: #{corr_loss.1} parent=76 // loop_header_branch
            %255 = sbr.rel (%p253) target = $region84
          $region81: #{corr_loss.1} parent=76 // loop_body
            %v259 = vld [vmem:[%s257] sm:%s250]
            %260 = vst [vmem:[%s258] sm:%s250] %v259
          $region82: #{corr_loss.1} parent=76 // loop_footer
            %s256 = sadd.s32 1, %s252
          $region83: #{corr_loss.1} parent=76 // loop_footer_branch
            %251 = sbr.rel target = $region79
          $region84: #{corr_loss.1} parent=76 // loop_exit
            _
        $region77: #{corr_loss.1} parent=61 // pred_fallthru
          _
      $region62: #{corr_loss.1} parent=27 // pred_fallthru
        _
      // Predicated region
      $region63: #{corr_loss.1} parent=27 // pred_check
        %p224 = pneg %p220
      $region64: #{corr_loss.1} parent=27 // pred_check_branch
        %226 = sbr.rel (%p224) target = $region66
      $region65: #{corr_loss.1} parent=27 // pred_region
        %s227 = sshll.u32 1, 1
        %s228 = ssub.s32 %s227, 1
        loop: start=0, step=1, limit=1
        $region67: #{corr_loss.1} parent=65 // loop_pre_header
          _
        $region68: #{corr_loss.1} parent=65 // loop_header
          %s230 = sphi 0, %s234
          %p231 = scmp.ge.s32.totalorder %s230, 1
          %s235 = sphi %s217, %s217
          %s236 = sphi %s218, %s218
        $region69: #{corr_loss.1} parent=65 // loop_header_branch
          %233 = sbr.rel (%p231) target = $region73
        $region70: #{corr_loss.1} parent=65 // loop_body
          %v237 = vld [vmem:[%s235] sm:%s228]
          %238 = vst [vmem:[%s236] sm:%s228] %v237
        $region71: #{corr_loss.1} parent=65 // loop_footer
          %s234 = sadd.s32 1, %s230
        $region72: #{corr_loss.1} parent=65 // loop_footer_branch
          %229 = sbr.rel target = $region68
        $region73: #{corr_loss.1} parent=65 // loop_exit
          _
      $region66: #{corr_loss.1} parent=27 // pred_fallthru
        _
      // Predicated region
      $region85: #{corr_loss.1} parent=27 // pred_check
        _
      $region86: #{corr_loss.1} parent=27 // pred_check_branch
        %263 = sbr.rel (0) target = $region88
      $region87: #{corr_loss.1} parent=27 // pred_region
        %264 = vsyncadd [#allocation4], 16
      $region88: #{corr_loss.1} parent=27 // pred_fallthru
        _
      %s265 = sadd.s32 %s166, 2
      %s266 = sld [smem:[#allocation6 + %s265]]
      %s267 = scalar_lea.vmem %s3, %s266
      %s268 = scalar_lea.vmem [#allocation2], 2
      %p270 = scmp.lt.u32.totalorder 1, 8
      %p271 = pneg %p270
      // Predicated region
      $region89: #{corr_loss.1} parent=27 // pred_check
        _
      $region90: #{corr_loss.1} parent=27 // pred_check_branch
        %273 = sbr.rel (%p270) target = $region92
      $region91: #{corr_loss.1} parent=27 // pred_region
        %s289 = sand.u32 1, 7
        %p290 = scmp.eq.s32.totalorder %s289, 0
        %p291 = pneg %p290
        // Predicated region
        $region104: #{corr_loss.1} parent=91 // pred_check
          _
        $region105: #{corr_loss.1} parent=91 // pred_check_branch
          %293 = sbr.rel (%p290) target = $region107
        $region106: #{corr_loss.1} parent=91 // pred_region
          %s294 = sand.u32 1, 7
          %s295 = ssub.s32 1, %s294
          %s296 = scalar_lea.vmem %s267, %s295
          %s297 = ssub.s32 1, %s294
          %s298 = scalar_lea.vmem %s268, %s297 [#allocation2]
          %s299 = sshll.u32 1, %s294
          %s300 = ssub.s32 %s299, 1
          loop: start=0, step=1, limit=1
          $region108: #{corr_loss.1} parent=106 // loop_pre_header
            _
          $region109: #{corr_loss.1} parent=106 // loop_header
            %s302 = sphi 0, %s306
            %p303 = scmp.ge.s32.totalorder %s302, 1
            %s307 = sphi %s296, %s296
            %s308 = sphi %s298, %s298
          $region110: #{corr_loss.1} parent=106 // loop_header_branch
            %305 = sbr.rel (%p303) target = $region114
          $region111: #{corr_loss.1} parent=106 // loop_body
            %v309 = vld [vmem:[%s307] sm:%s300]
            %310 = vst [vmem:[%s308] sm:%s300] %v309
          $region112: #{corr_loss.1} parent=106 // loop_footer
            %s306 = sadd.s32 1, %s302
          $region113: #{corr_loss.1} parent=106 // loop_footer_branch
            %301 = sbr.rel target = $region109
          $region114: #{corr_loss.1} parent=106 // loop_exit
            _
        $region107: #{corr_loss.1} parent=91 // pred_fallthru
          _
      $region92: #{corr_loss.1} parent=27 // pred_fallthru
        _
      // Predicated region
      $region93: #{corr_loss.1} parent=27 // pred_check
        %p274 = pneg %p270
      $region94: #{corr_loss.1} parent=27 // pred_check_branch
        %276 = sbr.rel (%p274) target = $region96
      $region95: #{corr_loss.1} parent=27 // pred_region
        %s277 = sshll.u32 1, 1
        %s278 = ssub.s32 %s277, 1
        loop: start=0, step=1, limit=1
        $region97: #{corr_loss.1} parent=95 // loop_pre_header
          _
        $region98: #{corr_loss.1} parent=95 // loop_header
          %s280 = sphi 0, %s284
          %p281 = scmp.ge.s32.totalorder %s280, 1
          %s285 = sphi %s267, %s267
          %s286 = sphi %s268, %s268
        $region99: #{corr_loss.1} parent=95 // loop_header_branch
          %283 = sbr.rel (%p281) target = $region103
        $region100: #{corr_loss.1} parent=95 // loop_body
          %v287 = vld [vmem:[%s285] sm:%s278]
          %288 = vst [vmem:[%s286] sm:%s278] %v287
        $region101: #{corr_loss.1} parent=95 // loop_footer
          %s284 = sadd.s32 1, %s280
        $region102: #{corr_loss.1} parent=95 // loop_footer_branch
          %279 = sbr.rel target = $region98
        $region103: #{corr_loss.1} parent=95 // loop_exit
          _
      $region96: #{corr_loss.1} parent=27 // pred_fallthru
        _
      // Predicated region
      $region115: #{corr_loss.1} parent=27 // pred_check
        _
      $region116: #{corr_loss.1} parent=27 // pred_check_branch
        %313 = sbr.rel (0) target = $region118
      $region117: #{corr_loss.1} parent=27 // pred_region
        %314 = vsyncadd [#allocation4], 16
      $region118: #{corr_loss.1} parent=27 // pred_fallthru
        _
      %s315 = sadd.s32 %s166, 3
      %s316 = sld [smem:[#allocation6 + %s315]]
      %s317 = scalar_lea.vmem %s3, %s316
      %s318 = scalar_lea.vmem [#allocation2], 3
      %p320 = scmp.lt.u32.totalorder 1, 8
      %p321 = pneg %p320
      // Predicated region
      $region119: #{corr_loss.1} parent=27 // pred_check
        _
      $region120: #{corr_loss.1} parent=27 // pred_check_branch
        %323 = sbr.rel (%p320) target = $region122
      $region121: #{corr_loss.1} parent=27 // pred_region
        %s339 = sand.u32 1, 7
        %p340 = scmp.eq.s32.totalorder %s339, 0
        %p341 = pneg %p340
        // Predicated region
        $region134: #{corr_loss.1} parent=121 // pred_check
          _
        $region135: #{corr_loss.1} parent=121 // pred_check_branch
          %343 = sbr.rel (%p340) target = $region137
        $region136: #{corr_loss.1} parent=121 // pred_region
          %s344 = sand.u32 1, 7
          %s345 = ssub.s32 1, %s344
          %s346 = scalar_lea.vmem %s317, %s345
          %s347 = ssub.s32 1, %s344
          %s348 = scalar_lea.vmem %s318, %s347 [#allocation2]
          %s349 = sshll.u32 1, %s344
          %s350 = ssub.s32 %s349, 1
          loop: start=0, step=1, limit=1
          $region138: #{corr_loss.1} parent=136 // loop_pre_header
            _
          $region139: #{corr_loss.1} parent=136 // loop_header
            %s352 = sphi 0, %s356
            %p353 = scmp.ge.s32.totalorder %s352, 1
            %s357 = sphi %s346, %s346
            %s358 = sphi %s348, %s348
          $region140: #{corr_loss.1} parent=136 // loop_header_branch
            %355 = sbr.rel (%p353) target = $region144
          $region141: #{corr_loss.1} parent=136 // loop_body
            %v359 = vld [vmem:[%s357] sm:%s350]
            %360 = vst [vmem:[%s358] sm:%s350] %v359
          $region142: #{corr_loss.1} parent=136 // loop_footer
            %s356 = sadd.s32 1, %s352
          $region143: #{corr_loss.1} parent=136 // loop_footer_branch
            %351 = sbr.rel target = $region139
          $region144: #{corr_loss.1} parent=136 // loop_exit
            _
        $region137: #{corr_loss.1} parent=121 // pred_fallthru
          _
      $region122: #{corr_loss.1} parent=27 // pred_fallthru
        _
      // Predicated region
      $region123: #{corr_loss.1} parent=27 // pred_check
        %p324 = pneg %p320
      $region124: #{corr_loss.1} parent=27 // pred_check_branch
        %326 = sbr.rel (%p324) target = $region126
      $region125: #{corr_loss.1} parent=27 // pred_region
        %s327 = sshll.u32 1, 1
        %s328 = ssub.s32 %s327, 1
        loop: start=0, step=1, limit=1
        $region127: #{corr_loss.1} parent=125 // loop_pre_header
          _
        $region128: #{corr_loss.1} parent=125 // loop_header
          %s330 = sphi 0, %s334
          %p331 = scmp.ge.s32.totalorder %s330, 1
          %s335 = sphi %s317, %s317
          %s336 = sphi %s318, %s318
        $region129: #{corr_loss.1} parent=125 // loop_header_branch
          %333 = sbr.rel (%p331) target = $region133
        $region130: #{corr_loss.1} parent=125 // loop_body
          %v337 = vld [vmem:[%s335] sm:%s328]
          %338 = vst [vmem:[%s336] sm:%s328] %v337
        $region131: #{corr_loss.1} parent=125 // loop_footer
          %s334 = sadd.s32 1, %s330
        $region132: #{corr_loss.1} parent=125 // loop_footer_branch
          %329 = sbr.rel target = $region128
        $region133: #{corr_loss.1} parent=125 // loop_exit
          _
      $region126: #{corr_loss.1} parent=27 // pred_fallthru
        _
      // Predicated region
      $region145: #{corr_loss.1} parent=27 // pred_check
        _
      $region146: #{corr_loss.1} parent=27 // pred_check_branch
        %363 = sbr.rel (0) target = $region148
      $region147: #{corr_loss.1} parent=27 // pred_region
        %364 = vsyncadd [#allocation4], 16
      $region148: #{corr_loss.1} parent=27 // pred_fallthru
        _
      %s365 = sadd.s32 %s166, 4
      %s366 = sld [smem:[#allocation6 + %s365]]
      %s367 = scalar_lea.vmem %s3, %s366
      %s368 = scalar_lea.vmem [#allocation2], 4
      %p370 = scmp.lt.u32.totalorder 1, 8
      %p371 = pneg %p370
      // Predicated region
      $region149: #{corr_loss.1} parent=27 // pred_check
        _
      $region150: #{corr_loss.1} parent=27 // pred_check_branch
        %373 = sbr.rel (%p370) target = $region152
      $region151: #{corr_loss.1} parent=27 // pred_region
        %s389 = sand.u32 1, 7
        %p390 = scmp.eq.s32.totalorder %s389, 0
        %p391 = pneg %p390
        // Predicated region
        $region164: #{corr_loss.1} parent=151 // pred_check
          _
        $region165: #{corr_loss.1} parent=151 // pred_check_branch
          %393 = sbr.rel (%p390) target = $region167
        $region166: #{corr_loss.1} parent=151 // pred_region
          %s394 = sand.u32 1, 7
          %s395 = ssub.s32 1, %s394
          %s396 = scalar_lea.vmem %s367, %s395
          %s397 = ssub.s32 1, %s394
          %s398 = scalar_lea.vmem %s368, %s397 [#allocation2]
          %s399 = sshll.u32 1, %s394
          %s400 = ssub.s32 %s399, 1
          loop: start=0, step=1, limit=1
          $region168: #{corr_loss.1} parent=166 // loop_pre_header
            _
          $region169: #{corr_loss.1} parent=166 // loop_header
            %s402 = sphi 0, %s406
            %p403 = scmp.ge.s32.totalorder %s402, 1
            %s407 = sphi %s396, %s396
            %s408 = sphi %s398, %s398
          $region170: #{corr_loss.1} parent=166 // loop_header_branch
            %405 = sbr.rel (%p403) target = $region174
          $region171: #{corr_loss.1} parent=166 // loop_body
            %v409 = vld [vmem:[%s407] sm:%s400]
            %410 = vst [vmem:[%s408] sm:%s400] %v409
          $region172: #{corr_loss.1} parent=166 // loop_footer
            %s406 = sadd.s32 1, %s402
          $region173: #{corr_loss.1} parent=166 // loop_footer_branch
            %401 = sbr.rel target = $region169
          $region174: #{corr_loss.1} parent=166 // loop_exit
            _
        $region167: #{corr_loss.1} parent=151 // pred_fallthru
          _
      $region152: #{corr_loss.1} parent=27 // pred_fallthru
        _
      // Predicated region
      $region153: #{corr_loss.1} parent=27 // pred_check
        %p374 = pneg %p370
      $region154: #{corr_loss.1} parent=27 // pred_check_branch
        %376 = sbr.rel (%p374) target = $region156
      $region155: #{corr_loss.1} parent=27 // pred_region
        %s377 = sshll.u32 1, 1
        %s378 = ssub.s32 %s377, 1
        loop: start=0, step=1, limit=1
        $region157: #{corr_loss.1} parent=155 // loop_pre_header
          _
        $region158: #{corr_loss.1} parent=155 // loop_header
          %s380 = sphi 0, %s384
          %p381 = scmp.ge.s32.totalorder %s380, 1
          %s385 = sphi %s367, %s367
          %s386 = sphi %s368, %s368
        $region159: #{corr_loss.1} parent=155 // loop_header_branch
          %383 = sbr.rel (%p381) target = $region163
        $region160: #{corr_loss.1} parent=155 // loop_body
          %v387 = vld [vmem:[%s385] sm:%s378]
          %388 = vst [vmem:[%s386] sm:%s378] %v387
        $region161: #{corr_loss.1} parent=155 // loop_footer
          %s384 = sadd.s32 1, %s380
        $region162: #{corr_loss.1} parent=155 // loop_footer_branch
          %379 = sbr.rel target = $region158
        $region163: #{corr_loss.1} parent=155 // loop_exit
          _
      $region156: #{corr_loss.1} parent=27 // pred_fallthru
        _
      // Predicated region
      $region175: #{corr_loss.1} parent=27 // pred_check
        _
      $region176: #{corr_loss.1} parent=27 // pred_check_branch
        %413 = sbr.rel (0) target = $region178
      $region177: #{corr_loss.1} parent=27 // pred_region
        %414 = vsyncadd [#allocation4], 16
      $region178: #{corr_loss.1} parent=27 // pred_fallthru
        _
      %s415 = sadd.s32 %s166, 5
      %s416 = sld [smem:[#allocation6 + %s415]]
      %s417 = scalar_lea.vmem %s3, %s416
      %s418 = scalar_lea.vmem [#allocation2], 5
      %p420 = scmp.lt.u32.totalorder 1, 8
      %p421 = pneg %p420
      // Predicated region
      $region179: #{corr_loss.1} parent=27 // pred_check
        _
      $region180: #{corr_loss.1} parent=27 // pred_check_branch
        %423 = sbr.rel (%p420) target = $region182
      $region181: #{corr_loss.1} parent=27 // pred_region
        %s439 = sand.u32 1, 7
        %p440 = scmp.eq.s32.totalorder %s439, 0
        %p441 = pneg %p440
        // Predicated region
        $region194: #{corr_loss.1} parent=181 // pred_check
          _
        $region195: #{corr_loss.1} parent=181 // pred_check_branch
          %443 = sbr.rel (%p440) target = $region197
        $region196: #{corr_loss.1} parent=181 // pred_region
          %s444 = sand.u32 1, 7
          %s445 = ssub.s32 1, %s444
          %s446 = scalar_lea.vmem %s417, %s445
          %s447 = ssub.s32 1, %s444
          %s448 = scalar_lea.vmem %s418, %s447 [#allocation2]
          %s449 = sshll.u32 1, %s444
          %s450 = ssub.s32 %s449, 1
          loop: start=0, step=1, limit=1
          $region198: #{corr_loss.1} parent=196 // loop_pre_header
            _
          $region199: #{corr_loss.1} parent=196 // loop_header
            %s452 = sphi 0, %s456
            %p453 = scmp.ge.s32.totalorder %s452, 1
            %s457 = sphi %s446, %s446
            %s458 = sphi %s448, %s448
          $region200: #{corr_loss.1} parent=196 // loop_header_branch
            %455 = sbr.rel (%p453) target = $region204
          $region201: #{corr_loss.1} parent=196 // loop_body
            %v459 = vld [vmem:[%s457] sm:%s450]
            %460 = vst [vmem:[%s458] sm:%s450] %v459
          $region202: #{corr_loss.1} parent=196 // loop_footer
            %s456 = sadd.s32 1, %s452
          $region203: #{corr_loss.1} parent=196 // loop_footer_branch
            %451 = sbr.rel target = $region199
          $region204: #{corr_loss.1} parent=196 // loop_exit
            _
        $region197: #{corr_loss.1} parent=181 // pred_fallthru
          _
      $region182: #{corr_loss.1} parent=27 // pred_fallthru
        _
      // Predicated region
      $region183: #{corr_loss.1} parent=27 // pred_check
        %p424 = pneg %p420
      $region184: #{corr_loss.1} parent=27 // pred_check_branch
        %426 = sbr.rel (%p424) target = $region186
      $region185: #{corr_loss.1} parent=27 // pred_region
        %s427 = sshll.u32 1, 1
        %s428 = ssub.s32 %s427, 1
        loop: start=0, step=1, limit=1
        $region187: #{corr_loss.1} parent=185 // loop_pre_header
          _
        $region188: #{corr_loss.1} parent=185 // loop_header
          %s430 = sphi 0, %s434
          %p431 = scmp.ge.s32.totalorder %s430, 1
          %s435 = sphi %s417, %s417
          %s436 = sphi %s418, %s418
        $region189: #{corr_loss.1} parent=185 // loop_header_branch
          %433 = sbr.rel (%p431) target = $region193
        $region190: #{corr_loss.1} parent=185 // loop_body
          %v437 = vld [vmem:[%s435] sm:%s428]
          %438 = vst [vmem:[%s436] sm:%s428] %v437
        $region191: #{corr_loss.1} parent=185 // loop_footer
          %s434 = sadd.s32 1, %s430
        $region192: #{corr_loss.1} parent=185 // loop_footer_branch
          %429 = sbr.rel target = $region188
        $region193: #{corr_loss.1} parent=185 // loop_exit
          _
      $region186: #{corr_loss.1} parent=27 // pred_fallthru
        _
      // Predicated region
      $region205: #{corr_loss.1} parent=27 // pred_check
        _
      $region206: #{corr_loss.1} parent=27 // pred_check_branch
        %463 = sbr.rel (0) target = $region208
      $region207: #{corr_loss.1} parent=27 // pred_region
        %464 = vsyncadd [#allocation4], 16
      $region208: #{corr_loss.1} parent=27 // pred_fallthru
        _
      %s465 = sadd.s32 %s166, 6
      %s466 = sld [smem:[#allocation6 + %s465]]
      %s467 = scalar_lea.vmem %s3, %s466
      %s468 = scalar_lea.vmem [#allocation2], 6
      %p470 = scmp.lt.u32.totalorder 1, 8
      %p471 = pneg %p470
      // Predicated region
      $region209: #{corr_loss.1} parent=27 // pred_check
        _
      $region210: #{corr_loss.1} parent=27 // pred_check_branch
        %473 = sbr.rel (%p470) target = $region212
      $region211: #{corr_loss.1} parent=27 // pred_region
        %s489 = sand.u32 1, 7
        %p490 = scmp.eq.s32.totalorder %s489, 0
        %p491 = pneg %p490
        // Predicated region
        $region224: #{corr_loss.1} parent=211 // pred_check
          _
        $region225: #{corr_loss.1} parent=211 // pred_check_branch
          %493 = sbr.rel (%p490) target = $region227
        $region226: #{corr_loss.1} parent=211 // pred_region
          %s494 = sand.u32 1, 7
          %s495 = ssub.s32 1, %s494
          %s496 = scalar_lea.vmem %s467, %s495
          %s497 = ssub.s32 1, %s494
          %s498 = scalar_lea.vmem %s468, %s497 [#allocation2]
          %s499 = sshll.u32 1, %s494
          %s500 = ssub.s32 %s499, 1
          loop: start=0, step=1, limit=1
          $region228: #{corr_loss.1} parent=226 // loop_pre_header
            _
          $region229: #{corr_loss.1} parent=226 // loop_header
            %s502 = sphi 0, %s506
            %p503 = scmp.ge.s32.totalorder %s502, 1
            %s507 = sphi %s496, %s496
            %s508 = sphi %s498, %s498
          $region230: #{corr_loss.1} parent=226 // loop_header_branch
            %505 = sbr.rel (%p503) target = $region234
          $region231: #{corr_loss.1} parent=226 // loop_body
            %v509 = vld [vmem:[%s507] sm:%s500]
            %510 = vst [vmem:[%s508] sm:%s500] %v509
          $region232: #{corr_loss.1} parent=226 // loop_footer
            %s506 = sadd.s32 1, %s502
          $region233: #{corr_loss.1} parent=226 // loop_footer_branch
            %501 = sbr.rel target = $region229
          $region234: #{corr_loss.1} parent=226 // loop_exit
            _
        $region227: #{corr_loss.1} parent=211 // pred_fallthru
          _
      $region212: #{corr_loss.1} parent=27 // pred_fallthru
        _
      // Predicated region
      $region213: #{corr_loss.1} parent=27 // pred_check
        %p474 = pneg %p470
      $region214: #{corr_loss.1} parent=27 // pred_check_branch
        %476 = sbr.rel (%p474) target = $region216
      $region215: #{corr_loss.1} parent=27 // pred_region
        %s477 = sshll.u32 1, 1
        %s478 = ssub.s32 %s477, 1
        loop: start=0, step=1, limit=1
        $region217: #{corr_loss.1} parent=215 // loop_pre_header
          _
        $region218: #{corr_loss.1} parent=215 // loop_header
          %s480 = sphi 0, %s484
          %p481 = scmp.ge.s32.totalorder %s480, 1
          %s485 = sphi %s467, %s467
          %s486 = sphi %s468, %s468
        $region219: #{corr_loss.1} parent=215 // loop_header_branch
          %483 = sbr.rel (%p481) target = $region223
        $region220: #{corr_loss.1} parent=215 // loop_body
          %v487 = vld [vmem:[%s485] sm:%s478]
          %488 = vst [vmem:[%s486] sm:%s478] %v487
        $region221: #{corr_loss.1} parent=215 // loop_footer
          %s484 = sadd.s32 1, %s480
        $region222: #{corr_loss.1} parent=215 // loop_footer_branch
          %479 = sbr.rel target = $region218
        $region223: #{corr_loss.1} parent=215 // loop_exit
          _
      $region216: #{corr_loss.1} parent=27 // pred_fallthru
        _
      // Predicated region
      $region235: #{corr_loss.1} parent=27 // pred_check
        _
      $region236: #{corr_loss.1} parent=27 // pred_check_branch
        %513 = sbr.rel (0) target = $region238
      $region237: #{corr_loss.1} parent=27 // pred_region
        %514 = vsyncadd [#allocation4], 16
      $region238: #{corr_loss.1} parent=27 // pred_fallthru
        _
      %s515 = sadd.s32 %s166, 7
      %s516 = sld [smem:[#allocation6 + %s515]]
      %s517 = scalar_lea.vmem %s3, %s516
      %s518 = scalar_lea.vmem [#allocation2], 7
      %p520 = scmp.lt.u32.totalorder 1, 8
      %p521 = pneg %p520
      // Predicated region
      $region239: #{corr_loss.1} parent=27 // pred_check
        _
      $region240: #{corr_loss.1} parent=27 // pred_check_branch
        %523 = sbr.rel (%p520) target = $region242
      $region241: #{corr_loss.1} parent=27 // pred_region
        %s539 = sand.u32 1, 7
        %p540 = scmp.eq.s32.totalorder %s539, 0
        %p541 = pneg %p540
        // Predicated region
        $region254: #{corr_loss.1} parent=241 // pred_check
          _
        $region255: #{corr_loss.1} parent=241 // pred_check_branch
          %543 = sbr.rel (%p540) target = $region257
        $region256: #{corr_loss.1} parent=241 // pred_region
          %s544 = sand.u32 1, 7
          %s545 = ssub.s32 1, %s544
          %s546 = scalar_lea.vmem %s517, %s545
          %s547 = ssub.s32 1, %s544
          %s548 = scalar_lea.vmem %s518, %s547 [#allocation2]
          %s549 = sshll.u32 1, %s544
          %s550 = ssub.s32 %s549, 1
          loop: start=0, step=1, limit=1
          $region258: #{corr_loss.1} parent=256 // loop_pre_header
            _
          $region259: #{corr_loss.1} parent=256 // loop_header
            %s552 = sphi 0, %s556
            %p553 = scmp.ge.s32.totalorder %s552, 1
            %s557 = sphi %s546, %s546
            %s558 = sphi %s548, %s548
          $region260: #{corr_loss.1} parent=256 // loop_header_branch
            %555 = sbr.rel (%p553) target = $region264
          $region261: #{corr_loss.1} parent=256 // loop_body
            %v559 = vld [vmem:[%s557] sm:%s550]
            %560 = vst [vmem:[%s558] sm:%s550] %v559
          $region262: #{corr_loss.1} parent=256 // loop_footer
            %s556 = sadd.s32 1, %s552
          $region263: #{corr_loss.1} parent=256 // loop_footer_branch
            %551 = sbr.rel target = $region259
          $region264: #{corr_loss.1} parent=256 // loop_exit
            _
        $region257: #{corr_loss.1} parent=241 // pred_fallthru
          _
      $region242: #{corr_loss.1} parent=27 // pred_fallthru
        _
      // Predicated region
      $region243: #{corr_loss.1} parent=27 // pred_check
        %p524 = pneg %p520
      $region244: #{corr_loss.1} parent=27 // pred_check_branch
        %526 = sbr.rel (%p524) target = $region246
      $region245: #{corr_loss.1} parent=27 // pred_region
        %s527 = sshll.u32 1, 1
        %s528 = ssub.s32 %s527, 1
        loop: start=0, step=1, limit=1
        $region247: #{corr_loss.1} parent=245 // loop_pre_header
          _
        $region248: #{corr_loss.1} parent=245 // loop_header
          %s530 = sphi 0, %s534
          %p531 = scmp.ge.s32.totalorder %s530, 1
          %s535 = sphi %s517, %s517
          %s536 = sphi %s518, %s518
        $region249: #{corr_loss.1} parent=245 // loop_header_branch
          %533 = sbr.rel (%p531) target = $region253
        $region250: #{corr_loss.1} parent=245 // loop_body
          %v537 = vld [vmem:[%s535] sm:%s528]
          %538 = vst [vmem:[%s536] sm:%s528] %v537
        $region251: #{corr_loss.1} parent=245 // loop_footer
          %s534 = sadd.s32 1, %s530
        $region252: #{corr_loss.1} parent=245 // loop_footer_branch
          %529 = sbr.rel target = $region248
        $region253: #{corr_loss.1} parent=245 // loop_exit
          _
      $region246: #{corr_loss.1} parent=27 // pred_fallthru
        _
      // Predicated region
      $region265: #{corr_loss.1} parent=27 // pred_check
        _
      $region266: #{corr_loss.1} parent=27 // pred_check_branch
        %563 = sbr.rel (0) target = $region268
      $region267: #{corr_loss.1} parent=27 // pred_region
        %564 = vsyncadd [#allocation4], 16
      $region268: #{corr_loss.1} parent=27 // pred_fallthru
        _
      %v565 = vld [vmem:[%s157] sm:$0xff]
      %v566 = vld [vmem:[%s161] sm:$0xff]
      %vm567 = vcmask 130048
      %v568 = vsel %vm567, %v565, -inf
      %569 = vmax.xlane.f32.xlu0 %v568
      %v570 = vpop.xlane.xlu0 %569
      %v571 = vsub.f32 %v565, %v570
      %v572 = vmul.f32 %v571, 1.442695
      %v573 = vpow.pop %v572
      %v574 = vsel %vm567, %v573, 0.0
      %575 = vadd.xlane.f32.xlu0 %v574
      %v576 = vpop.xlane.xlu0 %575
      %v577 = vrcp.pop %v576
      %v578 = vmul.f32 %v576, %v577
      %v579 = vsub.f32 2.0, %v578
      %v580 = vmul.f32 %v577, %v579
      %v581 = vmul.f32 %v576, %v580
      %v582 = vsub.f32 2.0, %v581
      %v583 = vmul.f32 %v580, %v582
      %v584 = vlog2.pop %v576
      %v585 = vmul.f32 %v584, 0.6931472
      %v586 = vsub.f32 %v571, %v585
      %v587 = vmul.f32 %v573, %v583
      %v588 = vsel %vm567, %v566, -inf
      %589 = vmax.xlane.f32.xlu0 %v588
      %v590 = vpop.xlane.xlu0 %589
      %v591 = vsub.f32 %v566, %v590
      %v592 = vmul.f32 %v591, 1.442695
      %v593 = vpow.pop %v592
      %v594 = vsel %vm567, %v593, 0.0
      %595 = vadd.xlane.f32.xlu0 %v594
      %v596 = vpop.xlane.xlu0 %595
      %v597 = vrcp.pop %v596
      %v598 = vmul.f32 %v596, %v597
      %v599 = vsub.f32 2.0, %v598
      %v600 = vmul.f32 %v597, %v599
      %v601 = vmul.f32 %v596, %v600
      %v602 = vsub.f32 2.0, %v601
      %v603 = vmul.f32 %v600, %v602
      %v604 = vlog2.pop %v596
      %v605 = vmul.f32 %v604, 0.6931472
      %v606 = vsub.f32 %v591, %v605
      %v607 = vmul.f32 %v593, %v603
      %609 = dma.done [#allocation4], 16
      %611 = dma.done [#allocation4], 16
      %613 = dma.done [#allocation4], 16
      %615 = dma.done [#allocation4], 16
      %617 = dma.done [#allocation4], 16
      %619 = dma.done [#allocation4], 16
      %621 = dma.done [#allocation4], 16
      %623 = dma.done [#allocation4], 16
      %v624 = vld [vmem:[#allocation2] sm:$0xff]
      %vm625 = vcmp.eq.f32.partialorder %v624, 0.0
      %v626 = vsel %vm625, 1, 0
      %v627 = vcvt.s32.f32 %v626
      %v628 = vsub.f32 1.0, %v587
      %v629 = vand.u32 2147483647, %v628
      %v630 = vadd.f32 %v629, 1e-09
      %v631 = vsub.f32 1.0, %v607
      %v632 = vand.u32 2147483647, %v631
      %v633 = vadd.f32 %v632, 1e-09
      %v634 = vmul.f32 %v630, %v633
      %v635 = vlog2.pop %v634
      %v636 = vmul.f32 %v635, 0.6931472
      %v637 = vsub.f32 0.0, %v636
      %v638 = vmul.f32 %v627, %v637
      %vm639 = vcmp.gt.f32.partialorder %v624, 0.0
      %v640 = vsel %vm639, %v624, 1.0
      %v641 = vlog2.pop %v640
      %v642 = vmul.f32 %v641, 0.6931472
      %v643 = vmul.f32 %v642, 2.0
      %v644 = vsub.f32 %v643, %v586
      %v645 = vsub.f32 %v644, %v606
      %v646 = vmul.f32 %v624, %v645
      %v647 = vadd.f32 %v638, %v646
      %v648 = vsel %vm567, %v647, 0.0
      %649 = vadd.xlane.f32.xlu0 %v648
      %v650 = vpop.xlane.xlu0 %649
      %v651 = vrot.slane %v650, 4
      %v652 = vadd.f32 %v650, %v651
      %v653 = vrot.slane %v652, 2
      %v654 = vadd.f32 %v652, %v653
      %v655 = vrot.slane %v654, 1
      %v656 = vadd.f32 %v654, %v655
      %657 = vst [vmem:[%s165] sm:$0xff] %v656
      %v658 = vsel %vm639, 1, 0
      %v659 = vcvt.s32.f32 %v658
      %v660 = vadd.f32 %v586, %v606
      %v661 = vmul.f32 %v660, 0.5
      %v662 = vmul.f32 %v661, 1.442695
      %v663 = vpow.pop %v662
      %v664 = vmul.f32 %v659, %v663
      %v665 = vsel %vm567, %v664, 0.0
      %666 = vadd.xlane.f32.xlu0 %v665
      %v667 = vpop.xlane.xlu0 %666
      %v668 = vadd.f32 %v667, 1e-09
      %v669 = vrcp.pop %v668
      %v670 = vmul.f32 %v668, %v669
      %v671 = vsub.f32 2.0, %v670
      %v672 = vmul.f32 %v669, %v671
      %v673 = vmul.f32 %v668, %v672
      %v674 = vsub.f32 2.0, %v673
      %v675 = vmul.f32 %v672, %v674
      %v676 = vmul.f32 %v664, %v675
      %677 = vst.msk [vmem:[#allocation3] sm:$0xff] %vm567, %v676
      %s678 = sld [smem:[#allocation6 + %s166]]
      %s679 = scalar_lea.vmem %s5, %s678
      %s680 = scalar_lea.sflag [#allocation4], 1
      %p682 = scmp.lt.u32.totalorder 1, 8
      %p683 = pneg %p682
      // Predicated region
      $region269: #{corr_loss.1} parent=27 // pred_check
        _
      $region270: #{corr_loss.1} parent=27 // pred_check_branch
        %685 = sbr.rel (%p682) target = $region272
      $region271: #{corr_loss.1} parent=27 // pred_region
        %s701 = sand.u32 1, 7
        %p702 = scmp.eq.s32.totalorder %s701, 0
        %p703 = pneg %p702
        // Predicated region
        $region284: #{corr_loss.1} parent=271 // pred_check
          _
        $region285: #{corr_loss.1} parent=271 // pred_check_branch
          %705 = sbr.rel (%p702) target = $region287
        $region286: #{corr_loss.1} parent=271 // pred_region
          %s706 = sand.u32 1, 7
          %s707 = ssub.s32 1, %s706
          %s708 = scalar_lea.vmem [#allocation3], %s707
          %s709 = ssub.s32 1, %s706
          %s710 = scalar_lea.vmem %s679, %s709
          %s711 = sshll.u32 1, %s706
          %s712 = ssub.s32 %s711, 1
          loop: start=0, step=1, limit=1
          $region288: #{corr_loss.1} parent=286 // loop_pre_header
            _
          $region289: #{corr_loss.1} parent=286 // loop_header
            %s714 = sphi 0, %s718
            %p715 = scmp.ge.s32.totalorder %s714, 1
            %s719 = sphi %s708, %s708
            %s720 = sphi %s710, %s710
          $region290: #{corr_loss.1} parent=286 // loop_header_branch
            %717 = sbr.rel (%p715) target = $region294
          $region291: #{corr_loss.1} parent=286 // loop_body
            %v721 = vld [vmem:[%s719] sm:%s712]
            %722 = vst [vmem:[%s720] sm:%s712] %v721
          $region292: #{corr_loss.1} parent=286 // loop_footer
            %s718 = sadd.s32 1, %s714
          $region293: #{corr_loss.1} parent=286 // loop_footer_branch
            %713 = sbr.rel target = $region289
          $region294: #{corr_loss.1} parent=286 // loop_exit
            _
        $region287: #{corr_loss.1} parent=271 // pred_fallthru
          _
      $region272: #{corr_loss.1} parent=27 // pred_fallthru
        _
      // Predicated region
      $region273: #{corr_loss.1} parent=27 // pred_check
        %p686 = pneg %p682
      $region274: #{corr_loss.1} parent=27 // pred_check_branch
        %688 = sbr.rel (%p686) target = $region276
      $region275: #{corr_loss.1} parent=27 // pred_region
        %s689 = sshll.u32 1, 1
        %s690 = ssub.s32 %s689, 1
        loop: start=0, step=1, limit=1
        $region277: #{corr_loss.1} parent=275 // loop_pre_header
          _
        $region278: #{corr_loss.1} parent=275 // loop_header
          %s692 = sphi 0, %s696
          %p693 = scmp.ge.s32.totalorder %s692, 1
          %s697 = sphi [#allocation3], [#allocation3]
          %s698 = sphi %s679, %s679
        $region279: #{corr_loss.1} parent=275 // loop_header_branch
          %695 = sbr.rel (%p693) target = $region283
        $region280: #{corr_loss.1} parent=275 // loop_body
          %v699 = vld [vmem:[%s697] sm:%s690]
          %700 = vst [vmem:[%s698] sm:%s690] %v699
        $region281: #{corr_loss.1} parent=275 // loop_footer
          %s696 = sadd.s32 1, %s692
        $region282: #{corr_loss.1} parent=275 // loop_footer_branch
          %691 = sbr.rel target = $region278
        $region283: #{corr_loss.1} parent=275 // loop_exit
          _
      $region276: #{corr_loss.1} parent=27 // pred_fallthru
        _
      // Predicated region
      $region295: #{corr_loss.1} parent=27 // pred_check
        _
      $region296: #{corr_loss.1} parent=27 // pred_check_branch
        %725 = sbr.rel (0) target = $region298
      $region297: #{corr_loss.1} parent=27 // pred_region
        %726 = vsyncadd %s680, 16
      $region298: #{corr_loss.1} parent=27 // pred_fallthru
        _
      %s727 = sld [smem:[#allocation6 + %s215]]
      %s728 = scalar_lea.vmem [#allocation3], 1
      %s729 = scalar_lea.vmem %s5, %s727
      %p731 = scmp.lt.u32.totalorder 1, 8
      %p732 = pneg %p731
      // Predicated region
      $region299: #{corr_loss.1} parent=27 // pred_check
        _
      $region300: #{corr_loss.1} parent=27 // pred_check_branch
        %734 = sbr.rel (%p731) target = $region302
      $region301: #{corr_loss.1} parent=27 // pred_region
        %s750 = sand.u32 1, 7
        %p751 = scmp.eq.s32.totalorder %s750, 0
        %p752 = pneg %p751
        // Predicated region
        $region314: #{corr_loss.1} parent=301 // pred_check
          _
        $region315: #{corr_loss.1} parent=301 // pred_check_branch
          %754 = sbr.rel (%p751) target = $region317
        $region316: #{corr_loss.1} parent=301 // pred_region
          %s755 = sand.u32 1, 7
          %s756 = ssub.s32 1, %s755
          %s757 = scalar_lea.vmem %s728, %s756 [#allocation3]
          %s758 = ssub.s32 1, %s755
          %s759 = scalar_lea.vmem %s729, %s758
          %s760 = sshll.u32 1, %s755
          %s761 = ssub.s32 %s760, 1
          loop: start=0, step=1, limit=1
          $region318: #{corr_loss.1} parent=316 // loop_pre_header
            _
          $region319: #{corr_loss.1} parent=316 // loop_header
            %s763 = sphi 0, %s767
            %p764 = scmp.ge.s32.totalorder %s763, 1
            %s768 = sphi %s757, %s757
            %s769 = sphi %s759, %s759
          $region320: #{corr_loss.1} parent=316 // loop_header_branch
            %766 = sbr.rel (%p764) target = $region324
          $region321: #{corr_loss.1} parent=316 // loop_body
            %v770 = vld [vmem:[%s768] sm:%s761]
            %771 = vst [vmem:[%s769] sm:%s761] %v770
          $region322: #{corr_loss.1} parent=316 // loop_footer
            %s767 = sadd.s32 1, %s763
          $region323: #{corr_loss.1} parent=316 // loop_footer_branch
            %762 = sbr.rel target = $region319
          $region324: #{corr_loss.1} parent=316 // loop_exit
            _
        $region317: #{corr_loss.1} parent=301 // pred_fallthru
          _
      $region302: #{corr_loss.1} parent=27 // pred_fallthru
        _
      // Predicated region
      $region303: #{corr_loss.1} parent=27 // pred_check
        %p735 = pneg %p731
      $region304: #{corr_loss.1} parent=27 // pred_check_branch
        %737 = sbr.rel (%p735) target = $region306
      $region305: #{corr_loss.1} parent=27 // pred_region
        %s738 = sshll.u32 1, 1
        %s739 = ssub.s32 %s738, 1
        loop: start=0, step=1, limit=1
        $region307: #{corr_loss.1} parent=305 // loop_pre_header
          _
        $region308: #{corr_loss.1} parent=305 // loop_header
          %s741 = sphi 0, %s745
          %p742 = scmp.ge.s32.totalorder %s741, 1
          %s746 = sphi %s728, %s728
          %s747 = sphi %s729, %s729
        $region309: #{corr_loss.1} parent=305 // loop_header_branch
          %744 = sbr.rel (%p742) target = $region313
        $region310: #{corr_loss.1} parent=305 // loop_body
          %v748 = vld [vmem:[%s746] sm:%s739]
          %749 = vst [vmem:[%s747] sm:%s739] %v748
        $region311: #{corr_loss.1} parent=305 // loop_footer
          %s745 = sadd.s32 1, %s741
        $region312: #{corr_loss.1} parent=305 // loop_footer_branch
          %740 = sbr.rel target = $region308
        $region313: #{corr_loss.1} parent=305 // loop_exit
          _
      $region306: #{corr_loss.1} parent=27 // pred_fallthru
        _
      // Predicated region
      $region325: #{corr_loss.1} parent=27 // pred_check
        _
      $region326: #{corr_loss.1} parent=27 // pred_check_branch
        %774 = sbr.rel (0) target = $region328
      $region327: #{corr_loss.1} parent=27 // pred_region
        %775 = vsyncadd %s680, 16
      $region328: #{corr_loss.1} parent=27 // pred_fallthru
        _
      %s776 = sld [smem:[#allocation6 + %s265]]
      %s777 = scalar_lea.vmem [#allocation3], 2
      %s778 = scalar_lea.vmem %s5, %s776
      %p780 = scmp.lt.u32.totalorder 1, 8
      %p781 = pneg %p780
      // Predicated region
      $region329: #{corr_loss.1} parent=27 // pred_check
        _
      $region330: #{corr_loss.1} parent=27 // pred_check_branch
        %783 = sbr.rel (%p780) target = $region332
      $region331: #{corr_loss.1} parent=27 // pred_region
        %s799 = sand.u32 1, 7
        %p800 = scmp.eq.s32.totalorder %s799, 0
        %p801 = pneg %p800
        // Predicated region
        $region344: #{corr_loss.1} parent=331 // pred_check
          _
        $region345: #{corr_loss.1} parent=331 // pred_check_branch
          %803 = sbr.rel (%p800) target = $region347
        $region346: #{corr_loss.1} parent=331 // pred_region
          %s804 = sand.u32 1, 7
          %s805 = ssub.s32 1, %s804
          %s806 = scalar_lea.vmem %s777, %s805 [#allocation3]
          %s807 = ssub.s32 1, %s804
          %s808 = scalar_lea.vmem %s778, %s807
          %s809 = sshll.u32 1, %s804
          %s810 = ssub.s32 %s809, 1
          loop: start=0, step=1, limit=1
          $region348: #{corr_loss.1} parent=346 // loop_pre_header
            _
          $region349: #{corr_loss.1} parent=346 // loop_header
            %s812 = sphi 0, %s816
            %p813 = scmp.ge.s32.totalorder %s812, 1
            %s817 = sphi %s806, %s806
            %s818 = sphi %s808, %s808
          $region350: #{corr_loss.1} parent=346 // loop_header_branch
            %815 = sbr.rel (%p813) target = $region354
          $region351: #{corr_loss.1} parent=346 // loop_body
            %v819 = vld [vmem:[%s817] sm:%s810]
            %820 = vst [vmem:[%s818] sm:%s810] %v819
          $region352: #{corr_loss.1} parent=346 // loop_footer
            %s816 = sadd.s32 1, %s812
          $region353: #{corr_loss.1} parent=346 // loop_footer_branch
            %811 = sbr.rel target = $region349
          $region354: #{corr_loss.1} parent=346 // loop_exit
            _
        $region347: #{corr_loss.1} parent=331 // pred_fallthru
          _
      $region332: #{corr_loss.1} parent=27 // pred_fallthru
        _
      // Predicated region
      $region333: #{corr_loss.1} parent=27 // pred_check
        %p784 = pneg %p780
      $region334: #{corr_loss.1} parent=27 // pred_check_branch
        %786 = sbr.rel (%p784) target = $region336
      $region335: #{corr_loss.1} parent=27 // pred_region
        %s787 = sshll.u32 1, 1
        %s788 = ssub.s32 %s787, 1
        loop: start=0, step=1, limit=1
        $region337: #{corr_loss.1} parent=335 // loop_pre_header
          _
        $region338: #{corr_loss.1} parent=335 // loop_header
          %s790 = sphi 0, %s794
          %p791 = scmp.ge.s32.totalorder %s790, 1
          %s795 = sphi %s777, %s777
          %s796 = sphi %s778, %s778
        $region339: #{corr_loss.1} parent=335 // loop_header_branch
          %793 = sbr.rel (%p791) target = $region343
        $region340: #{corr_loss.1} parent=335 // loop_body
          %v797 = vld [vmem:[%s795] sm:%s788]
          %798 = vst [vmem:[%s796] sm:%s788] %v797
        $region341: #{corr_loss.1} parent=335 // loop_footer
          %s794 = sadd.s32 1, %s790
        $region342: #{corr_loss.1} parent=335 // loop_footer_branch
          %789 = sbr.rel target = $region338
        $region343: #{corr_loss.1} parent=335 // loop_exit
          _
      $region336: #{corr_loss.1} parent=27 // pred_fallthru
        _
      // Predicated region
      $region355: #{corr_loss.1} parent=27 // pred_check
        _
      $region356: #{corr_loss.1} parent=27 // pred_check_branch
        %823 = sbr.rel (0) target = $region358
      $region357: #{corr_loss.1} parent=27 // pred_region
        %824 = vsyncadd %s680, 16
      $region358: #{corr_loss.1} parent=27 // pred_fallthru
        _
      %s825 = sld [smem:[#allocation6 + %s315]]
      %s826 = scalar_lea.vmem [#allocation3], 3
      %s827 = scalar_lea.vmem %s5, %s825
      %p829 = scmp.lt.u32.totalorder 1, 8
      %p830 = pneg %p829
      // Predicated region
      $region359: #{corr_loss.1} parent=27 // pred_check
        _
      $region360: #{corr_loss.1} parent=27 // pred_check_branch
        %832 = sbr.rel (%p829) target = $region362
      $region361: #{corr_loss.1} parent=27 // pred_region
        %s848 = sand.u32 1, 7
        %p849 = scmp.eq.s32.totalorder %s848, 0
        %p850 = pneg %p849
        // Predicated region
        $region374: #{corr_loss.1} parent=361 // pred_check
          _
        $region375: #{corr_loss.1} parent=361 // pred_check_branch
          %852 = sbr.rel (%p849) target = $region377
        $region376: #{corr_loss.1} parent=361 // pred_region
          %s853 = sand.u32 1, 7
          %s854 = ssub.s32 1, %s853
          %s855 = scalar_lea.vmem %s826, %s854 [#allocation3]
          %s856 = ssub.s32 1, %s853
          %s857 = scalar_lea.vmem %s827, %s856
          %s858 = sshll.u32 1, %s853
          %s859 = ssub.s32 %s858, 1
          loop: start=0, step=1, limit=1
          $region378: #{corr_loss.1} parent=376 // loop_pre_header
            _
          $region379: #{corr_loss.1} parent=376 // loop_header
            %s861 = sphi 0, %s865
            %p862 = scmp.ge.s32.totalorder %s861, 1
            %s866 = sphi %s855, %s855
            %s867 = sphi %s857, %s857
          $region380: #{corr_loss.1} parent=376 // loop_header_branch
            %864 = sbr.rel (%p862) target = $region384
          $region381: #{corr_loss.1} parent=376 // loop_body
            %v868 = vld [vmem:[%s866] sm:%s859]
            %869 = vst [vmem:[%s867] sm:%s859] %v868
          $region382: #{corr_loss.1} parent=376 // loop_footer
            %s865 = sadd.s32 1, %s861
          $region383: #{corr_loss.1} parent=376 // loop_footer_branch
            %860 = sbr.rel target = $region379
          $region384: #{corr_loss.1} parent=376 // loop_exit
            _
        $region377: #{corr_loss.1} parent=361 // pred_fallthru
          _
      $region362: #{corr_loss.1} parent=27 // pred_fallthru
        _
      // Predicated region
      $region363: #{corr_loss.1} parent=27 // pred_check
        %p833 = pneg %p829
      $region364: #{corr_loss.1} parent=27 // pred_check_branch
        %835 = sbr.rel (%p833) target = $region366
      $region365: #{corr_loss.1} parent=27 // pred_region
        %s836 = sshll.u32 1, 1
        %s837 = ssub.s32 %s836, 1
        loop: start=0, step=1, limit=1
        $region367: #{corr_loss.1} parent=365 // loop_pre_header
          _
        $region368: #{corr_loss.1} parent=365 // loop_header
          %s839 = sphi 0, %s843
          %p840 = scmp.ge.s32.totalorder %s839, 1
          %s844 = sphi %s826, %s826
          %s845 = sphi %s827, %s827
        $region369: #{corr_loss.1} parent=365 // loop_header_branch
          %842 = sbr.rel (%p840) target = $region373
        $region370: #{corr_loss.1} parent=365 // loop_body
          %v846 = vld [vmem:[%s844] sm:%s837]
          %847 = vst [vmem:[%s845] sm:%s837] %v846
        $region371: #{corr_loss.1} parent=365 // loop_footer
          %s843 = sadd.s32 1, %s839
        $region372: #{corr_loss.1} parent=365 // loop_footer_branch
          %838 = sbr.rel target = $region368
        $region373: #{corr_loss.1} parent=365 // loop_exit
          _
      $region366: #{corr_loss.1} parent=27 // pred_fallthru
        _
      // Predicated region
      $region385: #{corr_loss.1} parent=27 // pred_check
        _
      $region386: #{corr_loss.1} parent=27 // pred_check_branch
        %872 = sbr.rel (0) target = $region388
      $region387: #{corr_loss.1} parent=27 // pred_region
        %873 = vsyncadd %s680, 16
      $region388: #{corr_loss.1} parent=27 // pred_fallthru
        _
      %s874 = sld [smem:[#allocation6 + %s365]]
      %s875 = scalar_lea.vmem [#allocation3], 4
      %s876 = scalar_lea.vmem %s5, %s874
      %p878 = scmp.lt.u32.totalorder 1, 8
      %p879 = pneg %p878
      // Predicated region
      $region389: #{corr_loss.1} parent=27 // pred_check
        _
      $region390: #{corr_loss.1} parent=27 // pred_check_branch
        %881 = sbr.rel (%p878) target = $region392
      $region391: #{corr_loss.1} parent=27 // pred_region
        %s897 = sand.u32 1, 7
        %p898 = scmp.eq.s32.totalorder %s897, 0
        %p899 = pneg %p898
        // Predicated region
        $region404: #{corr_loss.1} parent=391 // pred_check
          _
        $region405: #{corr_loss.1} parent=391 // pred_check_branch
          %901 = sbr.rel (%p898) target = $region407
        $region406: #{corr_loss.1} parent=391 // pred_region
          %s902 = sand.u32 1, 7
          %s903 = ssub.s32 1, %s902
          %s904 = scalar_lea.vmem %s875, %s903 [#allocation3]
          %s905 = ssub.s32 1, %s902
          %s906 = scalar_lea.vmem %s876, %s905
          %s907 = sshll.u32 1, %s902
          %s908 = ssub.s32 %s907, 1
          loop: start=0, step=1, limit=1
          $region408: #{corr_loss.1} parent=406 // loop_pre_header
            _
          $region409: #{corr_loss.1} parent=406 // loop_header
            %s910 = sphi 0, %s914
            %p911 = scmp.ge.s32.totalorder %s910, 1
            %s915 = sphi %s904, %s904
            %s916 = sphi %s906, %s906
          $region410: #{corr_loss.1} parent=406 // loop_header_branch
            %913 = sbr.rel (%p911) target = $region414
          $region411: #{corr_loss.1} parent=406 // loop_body
            %v917 = vld [vmem:[%s915] sm:%s908]
            %918 = vst [vmem:[%s916] sm:%s908] %v917
          $region412: #{corr_loss.1} parent=406 // loop_footer
            %s914 = sadd.s32 1, %s910
          $region413: #{corr_loss.1} parent=406 // loop_footer_branch
            %909 = sbr.rel target = $region409
          $region414: #{corr_loss.1} parent=406 // loop_exit
            _
        $region407: #{corr_loss.1} parent=391 // pred_fallthru
          _
      $region392: #{corr_loss.1} parent=27 // pred_fallthru
        _
      // Predicated region
      $region393: #{corr_loss.1} parent=27 // pred_check
        %p882 = pneg %p878
      $region394: #{corr_loss.1} parent=27 // pred_check_branch
        %884 = sbr.rel (%p882) target = $region396
      $region395: #{corr_loss.1} parent=27 // pred_region
        %s885 = sshll.u32 1, 1
        %s886 = ssub.s32 %s885, 1
        loop: start=0, step=1, limit=1
        $region397: #{corr_loss.1} parent=395 // loop_pre_header
          _
        $region398: #{corr_loss.1} parent=395 // loop_header
          %s888 = sphi 0, %s892
          %p889 = scmp.ge.s32.totalorder %s888, 1
          %s893 = sphi %s875, %s875
          %s894 = sphi %s876, %s876
        $region399: #{corr_loss.1} parent=395 // loop_header_branch
          %891 = sbr.rel (%p889) target = $region403
        $region400: #{corr_loss.1} parent=395 // loop_body
          %v895 = vld [vmem:[%s893] sm:%s886]
          %896 = vst [vmem:[%s894] sm:%s886] %v895
        $region401: #{corr_loss.1} parent=395 // loop_footer
          %s892 = sadd.s32 1, %s888
        $region402: #{corr_loss.1} parent=395 // loop_footer_branch
          %887 = sbr.rel target = $region398
        $region403: #{corr_loss.1} parent=395 // loop_exit
          _
      $region396: #{corr_loss.1} parent=27 // pred_fallthru
        _
      // Predicated region
      $region415: #{corr_loss.1} parent=27 // pred_check
        _
      $region416: #{corr_loss.1} parent=27 // pred_check_branch
        %921 = sbr.rel (0) target = $region418
      $region417: #{corr_loss.1} parent=27 // pred_region
        %922 = vsyncadd %s680, 16
      $region418: #{corr_loss.1} parent=27 // pred_fallthru
        _
      %s923 = sld [smem:[#allocation6 + %s415]]
      %s924 = scalar_lea.vmem [#allocation3], 5
      %s925 = scalar_lea.vmem %s5, %s923
      %p927 = scmp.lt.u32.totalorder 1, 8
      %p928 = pneg %p927
      // Predicated region
      $region419: #{corr_loss.1} parent=27 // pred_check
        _
      $region420: #{corr_loss.1} parent=27 // pred_check_branch
        %930 = sbr.rel (%p927) target = $region422
      $region421: #{corr_loss.1} parent=27 // pred_region
        %s946 = sand.u32 1, 7
        %p947 = scmp.eq.s32.totalorder %s946, 0
        %p948 = pneg %p947
        // Predicated region
        $region434: #{corr_loss.1} parent=421 // pred_check
          _
        $region435: #{corr_loss.1} parent=421 // pred_check_branch
          %950 = sbr.rel (%p947) target = $region437
        $region436: #{corr_loss.1} parent=421 // pred_region
          %s951 = sand.u32 1, 7
          %s952 = ssub.s32 1, %s951
          %s953 = scalar_lea.vmem %s924, %s952 [#allocation3]
          %s954 = ssub.s32 1, %s951
          %s955 = scalar_lea.vmem %s925, %s954
          %s956 = sshll.u32 1, %s951
          %s957 = ssub.s32 %s956, 1
          loop: start=0, step=1, limit=1
          $region438: #{corr_loss.1} parent=436 // loop_pre_header
            _
          $region439: #{corr_loss.1} parent=436 // loop_header
            %s959 = sphi 0, %s963
            %p960 = scmp.ge.s32.totalorder %s959, 1
            %s964 = sphi %s953, %s953
            %s965 = sphi %s955, %s955
          $region440: #{corr_loss.1} parent=436 // loop_header_branch
            %962 = sbr.rel (%p960) target = $region444
          $region441: #{corr_loss.1} parent=436 // loop_body
            %v966 = vld [vmem:[%s964] sm:%s957]
            %967 = vst [vmem:[%s965] sm:%s957] %v966
          $region442: #{corr_loss.1} parent=436 // loop_footer
            %s963 = sadd.s32 1, %s959
          $region443: #{corr_loss.1} parent=436 // loop_footer_branch
            %958 = sbr.rel target = $region439
          $region444: #{corr_loss.1} parent=436 // loop_exit
            _
        $region437: #{corr_loss.1} parent=421 // pred_fallthru
          _
      $region422: #{corr_loss.1} parent=27 // pred_fallthru
        _
      // Predicated region
      $region423: #{corr_loss.1} parent=27 // pred_check
        %p931 = pneg %p927
      $region424: #{corr_loss.1} parent=27 // pred_check_branch
        %933 = sbr.rel (%p931) target = $region426
      $region425: #{corr_loss.1} parent=27 // pred_region
        %s934 = sshll.u32 1, 1
        %s935 = ssub.s32 %s934, 1
        loop: start=0, step=1, limit=1
        $region427: #{corr_loss.1} parent=425 // loop_pre_header
          _
        $region428: #{corr_loss.1} parent=425 // loop_header
          %s937 = sphi 0, %s941
          %p938 = scmp.ge.s32.totalorder %s937, 1
          %s942 = sphi %s924, %s924
          %s943 = sphi %s925, %s925
        $region429: #{corr_loss.1} parent=425 // loop_header_branch
          %940 = sbr.rel (%p938) target = $region433
        $region430: #{corr_loss.1} parent=425 // loop_body
          %v944 = vld [vmem:[%s942] sm:%s935]
          %945 = vst [vmem:[%s943] sm:%s935] %v944
        $region431: #{corr_loss.1} parent=425 // loop_footer
          %s941 = sadd.s32 1, %s937
        $region432: #{corr_loss.1} parent=425 // loop_footer_branch
          %936 = sbr.rel target = $region428
        $region433: #{corr_loss.1} parent=425 // loop_exit
          _
      $region426: #{corr_loss.1} parent=27 // pred_fallthru
        _
      // Predicated region
      $region445: #{corr_loss.1} parent=27 // pred_check
        _
      $region446: #{corr_loss.1} parent=27 // pred_check_branch
        %970 = sbr.rel (0) target = $region448
      $region447: #{corr_loss.1} parent=27 // pred_region
        %971 = vsyncadd %s680, 16
      $region448: #{corr_loss.1} parent=27 // pred_fallthru
        _
      %s972 = sld [smem:[#allocation6 + %s465]]
      %s973 = scalar_lea.vmem [#allocation3], 6
      %s974 = scalar_lea.vmem %s5, %s972
      %p976 = scmp.lt.u32.totalorder 1, 8
      %p977 = pneg %p976
      // Predicated region
      $region449: #{corr_loss.1} parent=27 // pred_check
        _
      $region450: #{corr_loss.1} parent=27 // pred_check_branch
        %979 = sbr.rel (%p976) target = $region452
      $region451: #{corr_loss.1} parent=27 // pred_region
        %s995 = sand.u32 1, 7
        %p996 = scmp.eq.s32.totalorder %s995, 0
        %p997 = pneg %p996
        // Predicated region
        $region464: #{corr_loss.1} parent=451 // pred_check
          _
        $region465: #{corr_loss.1} parent=451 // pred_check_branch
          %999 = sbr.rel (%p996) target = $region467
        $region466: #{corr_loss.1} parent=451 // pred_region
          %s1000 = sand.u32 1, 7
          %s1001 = ssub.s32 1, %s1000
          %s1002 = scalar_lea.vmem %s973, %s1001 [#allocation3]
          %s1003 = ssub.s32 1, %s1000
          %s1004 = scalar_lea.vmem %s974, %s1003
          %s1005 = sshll.u32 1, %s1000
          %s1006 = ssub.s32 %s1005, 1
          loop: start=0, step=1, limit=1
          $region468: #{corr_loss.1} parent=466 // loop_pre_header
            _
          $region469: #{corr_loss.1} parent=466 // loop_header
            %s1008 = sphi 0, %s1012
            %p1009 = scmp.ge.s32.totalorder %s1008, 1
            %s1013 = sphi %s1002, %s1002
            %s1014 = sphi %s1004, %s1004
          $region470: #{corr_loss.1} parent=466 // loop_header_branch
            %1011 = sbr.rel (%p1009) target = $region474
          $region471: #{corr_loss.1} parent=466 // loop_body
            %v1015 = vld [vmem:[%s1013] sm:%s1006]
            %1016 = vst [vmem:[%s1014] sm:%s1006] %v1015
          $region472: #{corr_loss.1} parent=466 // loop_footer
            %s1012 = sadd.s32 1, %s1008
          $region473: #{corr_loss.1} parent=466 // loop_footer_branch
            %1007 = sbr.rel target = $region469
          $region474: #{corr_loss.1} parent=466 // loop_exit
            _
        $region467: #{corr_loss.1} parent=451 // pred_fallthru
          _
      $region452: #{corr_loss.1} parent=27 // pred_fallthru
        _
      // Predicated region
      $region453: #{corr_loss.1} parent=27 // pred_check
        %p980 = pneg %p976
      $region454: #{corr_loss.1} parent=27 // pred_check_branch
        %982 = sbr.rel (%p980) target = $region456
      $region455: #{corr_loss.1} parent=27 // pred_region
        %s983 = sshll.u32 1, 1
        %s984 = ssub.s32 %s983, 1
        loop: start=0, step=1, limit=1
        $region457: #{corr_loss.1} parent=455 // loop_pre_header
          _
        $region458: #{corr_loss.1} parent=455 // loop_header
          %s986 = sphi 0, %s990
          %p987 = scmp.ge.s32.totalorder %s986, 1
          %s991 = sphi %s973, %s973
          %s992 = sphi %s974, %s974
        $region459: #{corr_loss.1} parent=455 // loop_header_branch
          %989 = sbr.rel (%p987) target = $region463
        $region460: #{corr_loss.1} parent=455 // loop_body
          %v993 = vld [vmem:[%s991] sm:%s984]
          %994 = vst [vmem:[%s992] sm:%s984] %v993
        $region461: #{corr_loss.1} parent=455 // loop_footer
          %s990 = sadd.s32 1, %s986
        $region462: #{corr_loss.1} parent=455 // loop_footer_branch
          %985 = sbr.rel target = $region458
        $region463: #{corr_loss.1} parent=455 // loop_exit
          _
      $region456: #{corr_loss.1} parent=27 // pred_fallthru
        _
      // Predicated region
      $region475: #{corr_loss.1} parent=27 // pred_check
        _
      $region476: #{corr_loss.1} parent=27 // pred_check_branch
        %1019 = sbr.rel (0) target = $region478
      $region477: #{corr_loss.1} parent=27 // pred_region
        %1020 = vsyncadd %s680, 16
      $region478: #{corr_loss.1} parent=27 // pred_fallthru
        _
      %s1021 = sld [smem:[#allocation6 + %s515]]
      %s1022 = scalar_lea.vmem [#allocation3], 7
      %s1023 = scalar_lea.vmem %s5, %s1021
      %p1025 = scmp.lt.u32.totalorder 1, 8
      %p1026 = pneg %p1025
      // Predicated region
      $region479: #{corr_loss.1} parent=27 // pred_check
        _
      $region480: #{corr_loss.1} parent=27 // pred_check_branch
        %1028 = sbr.rel (%p1025) target = $region482
      $region481: #{corr_loss.1} parent=27 // pred_region
        %s1044 = sand.u32 1, 7
        %p1045 = scmp.eq.s32.totalorder %s1044, 0
        %p1046 = pneg %p1045
        // Predicated region
        $region494: #{corr_loss.1} parent=481 // pred_check
          _
        $region495: #{corr_loss.1} parent=481 // pred_check_branch
          %1048 = sbr.rel (%p1045) target = $region497
        $region496: #{corr_loss.1} parent=481 // pred_region
          %s1049 = sand.u32 1, 7
          %s1050 = ssub.s32 1, %s1049
          %s1051 = scalar_lea.vmem %s1022, %s1050 [#allocation3]
          %s1052 = ssub.s32 1, %s1049
          %s1053 = scalar_lea.vmem %s1023, %s1052
          %s1054 = sshll.u32 1, %s1049
          %s1055 = ssub.s32 %s1054, 1
          loop: start=0, step=1, limit=1
          $region498: #{corr_loss.1} parent=496 // loop_pre_header
            _
          $region499: #{corr_loss.1} parent=496 // loop_header
            %s1057 = sphi 0, %s1061
            %p1058 = scmp.ge.s32.totalorder %s1057, 1
            %s1062 = sphi %s1051, %s1051
            %s1063 = sphi %s1053, %s1053
          $region500: #{corr_loss.1} parent=496 // loop_header_branch
            %1060 = sbr.rel (%p1058) target = $region504
          $region501: #{corr_loss.1} parent=496 // loop_body
            %v1064 = vld [vmem:[%s1062] sm:%s1055]
            %1065 = vst [vmem:[%s1063] sm:%s1055] %v1064
          $region502: #{corr_loss.1} parent=496 // loop_footer
            %s1061 = sadd.s32 1, %s1057
          $region503: #{corr_loss.1} parent=496 // loop_footer_branch
            %1056 = sbr.rel target = $region499
          $region504: #{corr_loss.1} parent=496 // loop_exit
            _
        $region497: #{corr_loss.1} parent=481 // pred_fallthru
          _
      $region482: #{corr_loss.1} parent=27 // pred_fallthru
        _
      // Predicated region
      $region483: #{corr_loss.1} parent=27 // pred_check
        %p1029 = pneg %p1025
      $region484: #{corr_loss.1} parent=27 // pred_check_branch
        %1031 = sbr.rel (%p1029) target = $region486
      $region485: #{corr_loss.1} parent=27 // pred_region
        %s1032 = sshll.u32 1, 1
        %s1033 = ssub.s32 %s1032, 1
        loop: start=0, step=1, limit=1
        $region487: #{corr_loss.1} parent=485 // loop_pre_header
          _
        $region488: #{corr_loss.1} parent=485 // loop_header
          %s1035 = sphi 0, %s1039
          %p1036 = scmp.ge.s32.totalorder %s1035, 1
          %s1040 = sphi %s1022, %s1022
          %s1041 = sphi %s1023, %s1023
        $region489: #{corr_loss.1} parent=485 // loop_header_branch
          %1038 = sbr.rel (%p1036) target = $region493
        $region490: #{corr_loss.1} parent=485 // loop_body
          %v1042 = vld [vmem:[%s1040] sm:%s1033]
          %1043 = vst [vmem:[%s1041] sm:%s1033] %v1042
        $region491: #{corr_loss.1} parent=485 // loop_footer
          %s1039 = sadd.s32 1, %s1035
        $region492: #{corr_loss.1} parent=485 // loop_footer_branch
          %1034 = sbr.rel target = $region488
        $region493: #{corr_loss.1} parent=485 // loop_exit
          _
      $region486: #{corr_loss.1} parent=27 // pred_fallthru
        _
      // Predicated region
      $region505: #{corr_loss.1} parent=27 // pred_check
        _
      $region506: #{corr_loss.1} parent=27 // pred_check_branch
        %1068 = sbr.rel (0) target = $region508
      $region507: #{corr_loss.1} parent=27 // pred_region
        %1069 = vsyncadd %s680, 16
      $region508: #{corr_loss.1} parent=27 // pred_fallthru
        _
      %1071 = dma.done %s680, 16
      %1073 = dma.done %s680, 16
      %1075 = dma.done %s680, 16
      %1077 = dma.done %s680, 16
      %1079 = dma.done %s680, 16
      %1081 = dma.done %s680, 16
      %1083 = dma.done %s680, 16
      %1085 = dma.done %s680, 16
      %p1086 = scmp.lt.s32.totalorder %s23, 1
      %s1087 = scalar_select %p1086, %s23, 1
      %s1088 = smul.addr %s1087, 8
      %s1089 = scalar_lea.vmem %s4, %s1088
      // Predicated region
      $region509: #{corr_loss.1} parent=27 // pred_check
        %p1090 = pneg %p93
      $region510: #{corr_loss.1} parent=27 // pred_check_branch
        %1092 = sbr.rel (%p1090) target = $region512
      $region511: #{corr_loss.1} parent=27 // pred_region
        _
      $region512: #{corr_loss.1} parent=27 // pred_fallthru
        _
    $region28: #{corr_loss.1} parent=5 // pred_fallthru
      _
    %p1093 = scmp.le.s32.totalorder 2, %s18
    // Predicated region
    $region513: #{corr_loss.1} parent=5 // pred_check
      %p1094 = pneg %p1093
    $region514: #{corr_loss.1} parent=5 // pred_check_branch
      %1096 = sbr.rel (%p1094) target = $region516
    $region515: #{corr_loss.1} parent=5 // pred_region
      %s1097 = ssub.s32 %s18, 2
      // Predicated region
      $region517: #{corr_loss.1} parent=515 // pred_check
        %p1098 = pneg %p99
      $region518: #{corr_loss.1} parent=515 // pred_check_branch
        %1100 = sbr.rel (%p1098) target = $region520
      $region519: #{corr_loss.1} parent=515 // pred_region
        %p1101 = scmp.lt.s32.totalorder %s24, 1
        %s1102 = scalar_select %p1101, %s24, 1
        %s1103 = smul.addr %s1102, 8
        %s1104 = scalar_lea.vmem %s4, %s1103
      $region520: #{corr_loss.1} parent=515 // pred_fallthru
        _
    $region516: #{corr_loss.1} parent=5 // pred_fallthru
      _
  $region6: #{corr_loss.1} parent=0 // loop_footer
    %s22 = sadd.s32 1, %s18
  $region7: #{corr_loss.1} parent=0 // loop_footer_branch
    %17 = sbr.rel target = $region3
  $region8: #{corr_loss.1} parent=0 // loop_exit
    _
  %1105 = vsyncmov [#allocation4]
  %s1106 = vpop.sfrf %1105
  %p1107 = scmp.eq.s32.totalorder %s1106, 0
  %p1108 = pneg %p1107
  %1110 = shalt.err (%p1108)
  %s1111 = scalar_lea.sflag [#allocation4], 1
  %1112 = vsyncmov %s1111
  %s1113 = vpop.sfrf %1112
  %p1114 = scmp.eq.s32.totalorder %s1113, 0
  %p1115 = pneg %p1114
  %1117 = shalt.err (%p1115)

</llo_original>
